<compile_context>
chip_gen: v6e
topology: v6e:2x2x1
jax: 0.10.0
libtpu: 0.0.40
codegen_flags: <defaults>
</compile_context>

<pallas_src>
import functools

import jax
import jax.numpy as jnp
from jax import lax
from jax.experimental import pallas as pl
from jax.experimental.pallas import tpu as pltpu


def _round_up(x, m):
    return ((x + m - 1) // m) * m


def fixed_padding_nhwc(x, kernel_size, dilation):
    """Mirror of the PyTorch fixed_padding (applied on H and W), NHWC layout."""
    k_eff = kernel_size + (kernel_size - 1) * (dilation - 1)
    pad_total = k_eff - 1
    pad_beg = pad_total // 2
    pad_end = pad_total - pad_beg
    return jnp.pad(x, ((0, 0), (pad_beg, pad_end), (pad_beg, pad_end), (0, 0)))


def _pick_tile_h(h_out, w_out, wp, cin_p, cout_p, stride, k_eff, itemsize,
                 budget_bytes=12 * 1024 * 1024):
    """Largest divisor of h_out whose per-step VMEM footprint fits the budget,
    preferring >= 2 tiles along H so the pipeline / megacore have work to split."""
    def step_bytes(d):
        halo = (d - 1) * stride + k_eff
        b = 2 * halo * wp * cin_p * itemsize        # double-buffered input block
        b += 2 * d * w_out * cout_p * itemsize      # double-buffered output block
        b += d * w_out * cout_p * 4                 # f32 accumulator
        return b

    divisors = [d for d in range(1, h_out + 1) if h_out % d == 0]
    fitting = [d for d in divisors if step_bytes(d) <= budget_bytes] or [1]
    multi = [d for d in fitting if h_out // d >= 2]
    return max(multi) if multi else max(fitting)


def _sepconv_kernel(x_ref, w_ref, b_ref, o_ref, *, kernel_size, stride, dilation,
                    tile_h, w_out):
    """One (batch, H-tile) step.

    x_ref : (halo_h, Wp, Cin_p)      padded input rows for this tile (incl. halo)
    w_ref : (K*K, Cin_p, Cout_p)     fused depthwise*BN*pointwise weights
    b_ref : (1, Cout_p)              BN bias folded through the pointwise conv (f32)
    o_ref : (tile_h, w_out, Cout_p)
    """
    cin_p = x_ref.shape[-1]
    cout_p = o_ref.shape[-1]
    m = tile_h * w_out

    acc = jnp.zeros((m, cout_p), jnp.float32)
    for kh in range(kernel_size):
        for kw in range(kernel_size):
            h0 = kh * dilation
            w0 = kw * dilation
            h1 = h0 + (tile_h - 1) * stride + 1
            w1 = w0 + (w_out - 1) * stride + 1
            patch = x_ref[h0:h1, w0:w1, :]              # (tile_h*s.., w_out*s.., Cin_p)
            if stride > 1:
                # TODO(synk): for stride > 1, pre-deinterleave W columns in the
                # wrapper to avoid sublane-strided slicing here.
                patch = patch[::stride, ::stride, :]
            acc = acc + jnp.dot(patch.reshape(m, cin_p),
                                w_ref[kh * kernel_size + kw],
                                preferred_element_type=jnp.float32)

    acc = acc + b_ref[...]                              # (1, Cout_p) broadcast
    o_ref[...] = acc.reshape(tile_h, w_out, cout_p).astype(o_ref.dtype)


def separable_conv2d(x_nchw, dw_weight, pw_weight, bn_gamma, bn_beta,
                     bn_mean, bn_var, *, kernel_size=3, stride=1, dilation=1,
                     eps=1e-5):
    """SeparableConv2d forward (eval-mode BN).

    x_nchw    : (N, Cin, H, W)          -- PyTorch layout in/out
    dw_weight : (Cin, 1, K, K)          -- depthwise conv weight
    pw_weight : (Cout, Cin, 1, 1)       -- pointwise conv weight
    bn_*      : (Cin,)
    returns   : (N, Cout, H_out, W_out)
    """
    n, cin, h, w = x_nchw.shape
    cout = pw_weight.shape[0]
    k_eff = kernel_size + (kernel_size - 1) * (dilation - 1)

    cin_p = _round_up(cin, 128)
    cout_p = _round_up(cout, 128)

    # ---- layout & padding (wrapper-side glue, runs in XLA) ----
    x_nhwc = jnp.transpose(x_nchw, (0, 2, 3, 1))
    xp = fixed_padding_nhwc(x_nhwc, kernel_size, dilation)
    xp = jnp.pad(xp, ((0, 0), (0, 0), (0, 0), (0, cin_p - cin)))
    _, hp, wp, _ = xp.shape
    h_out = (hp - k_eff) // stride + 1
    w_out = (wp - k_eff) // stride + 1

    # ---- fold BN into the fused depthwise x pointwise weights ----
    scale = bn_gamma / jnp.sqrt(bn_var + eps)                       # (Cin,)
    bias = bn_beta - bn_mean * scale                                # (Cin,)
    pw_t = pw_weight[:, :, 0, 0].T                                  # (Cin, Cout)
    dw_s = dw_weight[:, 0, :, :] * scale[:, None, None]             # (Cin, K, K)
    w_fused = jnp.einsum('ckl,cd->klcd', dw_s, pw_t)                # (K, K, Cin, Cout)
    w_fused = w_fused.reshape(kernel_size * kernel_size, cin, cout)
    w_fused = jnp.pad(w_fused, ((0, 0), (0, cin_p - cin), (0, cout_p - cout)))
    w_fused = w_fused.astype(x_nchw.dtype)
    bias_pw = (bias @ pw_t).astype(jnp.float32)                     # (Cout,)
    bias_pw = jnp.pad(bias_pw, (0, cout_p - cout)).reshape(1, cout_p)

    # ---- pick an H tile and build halo-duplicated row tiles ----
    itemsize = jnp.dtype(x_nchw.dtype).itemsize
    tile_h = _pick_tile_h(h_out, w_out, wp, cin_p, cout_p, stride, k_eff, itemsize)
    n_tiles = h_out // tile_h
    halo_h = (tile_h - 1) * stride + k_eff
    x_tiles = jnp.stack(
        [lax.slice_in_dim(xp, t * tile_h * stride, t * tile_h * stride + halo_h, axis=1)
         for t in range(n_tiles)],
        axis=1)                                                     # (N, T, halo_h, Wp, Cin_p)

    kernel = functools.partial(
        _sepconv_kernel, kernel_size=kernel_size, stride=stride,
        dilation=dilation, tile_h=tile_h, w_out=w_out)

    flops = 2 * n * h_out * w_out * kernel_size * kernel_size * cin_p * cout_p
    bytes_accessed = (x_tiles.size * itemsize + w_fused.size * itemsize
                      + bias_pw.size * 4 + n * h_out * w_out * cout_p * itemsize)

    out = pl.pallas_call(
        kernel,
        out_shape=jax.ShapeDtypeStruct((n, n_tiles, tile_h, w_out, cout_p),
                                       x_nchw.dtype),
        grid_spec=pltpu.PrefetchScalarGridSpec(
            num_scalar_prefetch=0,
            grid=(n, n_tiles),
            in_specs=[
                pl.BlockSpec((None, None, halo_h, wp, cin_p),
                             lambda b, t: (b, t, 0, 0, 0)),
                pl.BlockSpec((kernel_size * kernel_size, cin_p, cout_p),
                             lambda b, t: (0, 0, 0)),
                pl.BlockSpec((1, cout_p), lambda b, t: (0, 0)),
            ],
            out_specs=pl.BlockSpec((None, None, tile_h, w_out, cout_p),
                                   lambda b, t: (b, t, 0, 0, 0)),
        ),
        compiler_params=pltpu.CompilerParams(
            dimension_semantics=("parallel", "parallel")),
        cost_estimate=pl.CostEstimate(flops=int(flops), transcendentals=0,
                                      bytes_accessed=int(bytes_accessed)),
    )(x_tiles, w_fused, bias_pw)

    # (N, T, tile_h, w_out, Cout_p) -> (N, H_out, W_out, Cout) -> NCHW
    out = out.reshape(n, h_out, w_out, cout_p)[..., :cout]
    return jnp.transpose(out, (0, 3, 1, 2))


def _reference(x_nchw, dw_weight, pw_weight, bn_gamma, bn_beta, bn_mean, bn_var,
               *, kernel_size=3, stride=1, dilation=1, eps=1e-5):
    """Pure-JAX reference (lax convs) for validation."""
    cin = x_nchw.shape[1]
    k_eff = kernel_size + (kernel_size - 1) * (dilation - 1)
    pad_total = k_eff - 1
    pad_beg = pad_total // 2
    pad_end = pad_total - pad_beg
    xp = jnp.pad(x_nchw, ((0, 0), (0, 0), (pad_beg, pad_end), (pad_beg, pad_end)))
    y = lax.conv_general_dilated(
        xp, dw_weight, window_strides=(stride, stride), padding='VALID',
        rhs_dilation=(dilation, dilation), feature_group_count=cin,
        dimension_numbers=('NCHW', 'OIHW', 'NCHW'))
    scale = bn_gamma / jnp.sqrt(bn_var + eps)
    bias = bn_beta - bn_mean * scale
    y = y * scale[None, :, None, None] + bias[None, :, None, None]
    y = lax.conv_general_dilated(
        y, pw_weight, window_strides=(1, 1), padding='VALID',
        dimension_numbers=('NCHW', 'OIHW', 'NCHW'))
    return y


if __name__ == "__main__":
    # Small shapes consistent with the module: batch=2, inplanes=4, planes=8, 16x16 spatial.
    N, CIN, COUT, H, W = 2, 4, 8, 16, 16
    K, STRIDE, DIL = 3, 1, 1

    key = jax.random.PRNGKey(0)
    k1, k2, k3, k4, k5, k6, k7 = jax.random.split(key, 7)

    x = jax.random.normal(k1, (N, CIN, H, W), dtype=jnp.float32)
    dw_weight = jax.random.normal(k2, (CIN, 1, K, K), dtype=jnp.float32) * 0.2
    pw_weight = jax.random.normal(k3, (COUT, CIN, 1, 1), dtype=jnp.float32) * 0.2
    bn_gamma = 1.0 + 0.1 * jax.random.normal(k4, (CIN,), dtype=jnp.float32)
    bn_beta = 0.1 * jax.random.normal(k5, (CIN,), dtype=jnp.float32)
    bn_mean = 0.1 * jax.random.normal(k6, (CIN,), dtype=jnp.float32)
    bn_var = jnp.abs(jax.random.normal(k7, (CIN,), dtype=jnp.float32)) + 0.5

    out = separable_conv2d(x, dw_weight, pw_weight, bn_gamma, bn_beta,
                           bn_mean, bn_var, kernel_size=K, stride=STRIDE,
                           dilation=DIL)
    out = jax.block_until_ready(out)

    ref = _reference(x, dw_weight, pw_weight, bn_gamma, bn_beta, bn_mean,
                     bn_var, kernel_size=K, stride=STRIDE, dilation=DIL)
    assert out.shape == (N, COUT, H, W), out.shape
    assert jnp.allclose(out, ref, atol=1e-4, rtol=1e-4), \
        float(jnp.max(jnp.abs(out - ref)))

    print("KERNEL_OK")
</pallas_src>

<mosaic_0001>
module attributes {stable_mosaic.version = 11 : i64} {
  func.func @_sepconv_kernel(%arg0: i32, %arg1: i32, %arg2: memref<1x1x10x18x128xf32, #tpu.memory_space<vmem>>, %arg3: memref<9x128x128xf32, #tpu.memory_space<vmem>>, %arg4: memref<1x128xf32, #tpu.memory_space<vmem>>, %arg5: memref<1x1x8x16x128xf32, #tpu.memory_space<vmem>>) attributes {dimension_semantics = [#tpu.dimension_semantics<parallel>, #tpu.dimension_semantics<parallel>], iteration_bounds = array<i64: 2, 2>, scalar_prefetch = 0 : i64, scratch_operands = 0 : i64, tpu.core_type = #tpu.core_type<tc>, window_params = [{transform_indices = @transform_0, window_bounds = array<i64: 1, 1, 10, 18, 128>}, {pipeline_mode = #tpu.pipeline_mode<synchronous>, transform_indices = @transform_1, window_bounds = array<i64: 9, 128, 128>}, {pipeline_mode = #tpu.pipeline_mode<synchronous>, transform_indices = @transform_2, window_bounds = array<i64: 1, 128>}, {transform_indices = @transform_3, window_bounds = array<i64: 1, 1, 8, 16, 128>}]} {
    %cst = arith.constant 0.000000e+00 : f32
    %0 = vector.broadcast %cst : f32 to vector<128x128xf32>
    %c0 = arith.constant 0 : index
    %c0_0 = arith.constant 0 : index
    %c0_1 = arith.constant 0 : index
    %c0_2 = arith.constant 0 : index
    %c0_3 = arith.constant 0 : index
    %1 = vector.load %arg2[%c0, %c0_0, %c0_1, %c0_2, %c0_3] : memref<1x1x10x18x128xf32, #tpu.memory_space<vmem>>, vector<1x1x8x16x128xf32>
    %2 = vector.shape_cast %1 : vector<1x1x8x16x128xf32> to vector<8x16x128xf32>
    %3 = vector.shape_cast %2 : vector<8x16x128xf32> to vector<128x128xf32>
    %c0_4 = arith.constant 0 : index
    %c0_5 = arith.constant 0 : index
    %c0_6 = arith.constant 0 : index
    %4 = vector.load %arg3[%c0_4, %c0_5, %c0_6] : memref<9x128x128xf32, #tpu.memory_space<vmem>>, vector<1x128x128xf32>
    %5 = vector.shape_cast %4 : vector<1x128x128xf32> to vector<128x128xf32>
    %cst_7 = arith.constant dense<0.000000e+00> : vector<128x128xf32>
    %6 = tpu.matmul %3, %5, %cst_7 {dimension_numbers = #tpu.dot_dimension_numbers<[1], [0], [0], [1], [0, 0, 1, 1], [], []>} : vector<128x128xf32>, vector<128x128xf32>, vector<128x128xf32> -> vector<128x128xf32>
    %7 = arith.addf %0, %6 : vector<128x128xf32>
    %c0_8 = arith.constant 0 : index
    %c0_9 = arith.constant 0 : index
    %c0_10 = arith.constant 0 : index
    %c1 = arith.constant 1 : index
    %c0_11 = arith.constant 0 : index
    %8 = vector.load %arg2[%c0_8, %c0_9, %c0_10, %c1, %c0_11] : memref<1x1x10x18x128xf32, #tpu.memory_space<vmem>>, vector<1x1x8x16x128xf32>
    %9 = vector.shape_cast %8 : vector<1x1x8x16x128xf32> to vector<8x16x128xf32>
    %10 = vector.shape_cast %9 : vector<8x16x128xf32> to vector<128x128xf32>
    %c1_12 = arith.constant 1 : index
    %c0_13 = arith.constant 0 : index
    %c0_14 = arith.constant 0 : index
    %11 = vector.load %arg3[%c1_12, %c0_13, %c0_14] : memref<9x128x128xf32, #tpu.memory_space<vmem>>, vector<1x128x128xf32>
    %12 = vector.shape_cast %11 : vector<1x128x128xf32> to vector<128x128xf32>
    %cst_15 = arith.constant dense<0.000000e+00> : vector<128x128xf32>
    %13 = tpu.matmul %10, %12, %cst_15 {dimension_numbers = #tpu.dot_dimension_numbers<[1], [0], [0], [1], [0, 0, 1, 1], [], []>} : vector<128x128xf32>, vector<128x128xf32>, vector<128x128xf32> -> vector<128x128xf32>
    %14 = arith.addf %7, %13 : vector<128x128xf32>
    %c0_16 = arith.constant 0 : index
    %c0_17 = arith.constant 0 : index
    %c0_18 = arith.constant 0 : index
    %c2 = arith.constant 2 : index
    %c0_19 = arith.constant 0 : index
    %15 = vector.load %arg2[%c0_16, %c0_17, %c0_18, %c2, %c0_19] : memref<1x1x10x18x128xf32, #tpu.memory_space<vmem>>, vector<1x1x8x16x128xf32>
    %16 = vector.shape_cast %15 : vector<1x1x8x16x128xf32> to vector<8x16x128xf32>
    %17 = vector.shape_cast %16 : vector<8x16x128xf32> to vector<128x128xf32>
    %c2_20 = arith.constant 2 : index
    %c0_21 = arith.constant 0 : index
    %c0_22 = arith.constant 0 : index
    %18 = vector.load %arg3[%c2_20, %c0_21, %c0_22] : memref<9x128x128xf32, #tpu.memory_space<vmem>>, vector<1x128x128xf32>
    %19 = vector.shape_cast %18 : vector<1x128x128xf32> to vector<128x128xf32>
    %cst_23 = arith.constant dense<0.000000e+00> : vector<128x128xf32>
    %20 = tpu.matmul %17, %19, %cst_23 {dimension_numbers = #tpu.dot_dimension_numbers<[1], [0], [0], [1], [0, 0, 1, 1], [], []>} : vector<128x128xf32>, vector<128x128xf32>, vector<128x128xf32> -> vector<128x128xf32>
    %21 = arith.addf %14, %20 : vector<128x128xf32>
    %c0_24 = arith.constant 0 : index
    %c0_25 = arith.constant 0 : index
    %c1_26 = arith.constant 1 : index
    %c0_27 = arith.constant 0 : index
    %c0_28 = arith.constant 0 : index
    %22 = vector.load %arg2[%c0_24, %c0_25, %c1_26, %c0_27, %c0_28] : memref<1x1x10x18x128xf32, #tpu.memory_space<vmem>>, vector<1x1x8x16x128xf32>
    %23 = vector.shape_cast %22 : vector<1x1x8x16x128xf32> to vector<8x16x128xf32>
    %24 = vector.shape_cast %23 : vector<8x16x128xf32> to vector<128x128xf32>
    %c3 = arith.constant 3 : index
    %c0_29 = arith.constant 0 : index
    %c0_30 = arith.constant 0 : index
    %25 = vector.load %arg3[%c3, %c0_29, %c0_30] : memref<9x128x128xf32, #tpu.memory_space<vmem>>, vector<1x128x128xf32>
    %26 = vector.shape_cast %25 : vector<1x128x128xf32> to vector<128x128xf32>
    %cst_31 = arith.constant dense<0.000000e+00> : vector<128x128xf32>
    %27 = tpu.matmul %24, %26, %cst_31 {dimension_numbers = #tpu.dot_dimension_numbers<[1], [0], [0], [1], [0, 0, 1, 1], [], []>} : vector<128x128xf32>, vector<128x128xf32>, vector<128x128xf32> -> vector<128x128xf32>
    %28 = arith.addf %21, %27 : vector<128x128xf32>
    %c0_32 = arith.constant 0 : index
    %c0_33 = arith.constant 0 : index
    %c1_34 = arith.constant 1 : index
    %c1_35 = arith.constant 1 : index
    %c0_36 = arith.constant 0 : index
    %29 = vector.load %arg2[%c0_32, %c0_33, %c1_34, %c1_35, %c0_36] : memref<1x1x10x18x128xf32, #tpu.memory_space<vmem>>, vector<1x1x8x16x128xf32>
    %30 = vector.shape_cast %29 : vector<1x1x8x16x128xf32> to vector<8x16x128xf32>
    %31 = vector.shape_cast %30 : vector<8x16x128xf32> to vector<128x128xf32>
    %c4 = arith.constant 4 : index
    %c0_37 = arith.constant 0 : index
    %c0_38 = arith.constant 0 : index
    %32 = vector.load %arg3[%c4, %c0_37, %c0_38] : memref<9x128x128xf32, #tpu.memory_space<vmem>>, vector<1x128x128xf32>
    %33 = vector.shape_cast %32 : vector<1x128x128xf32> to vector<128x128xf32>
    %cst_39 = arith.constant dense<0.000000e+00> : vector<128x128xf32>
    %34 = tpu.matmul %31, %33, %cst_39 {dimension_numbers = #tpu.dot_dimension_numbers<[1], [0], [0], [1], [0, 0, 1, 1], [], []>} : vector<128x128xf32>, vector<128x128xf32>, vector<128x128xf32> -> vector<128x128xf32>
    %35 = arith.addf %28, %34 : vector<128x128xf32>
    %c0_40 = arith.constant 0 : index
    %c0_41 = arith.constant 0 : index
    %c1_42 = arith.constant 1 : index
    %c2_43 = arith.constant 2 : index
    %c0_44 = arith.constant 0 : index
    %36 = vector.load %arg2[%c0_40, %c0_41, %c1_42, %c2_43, %c0_44] : memref<1x1x10x18x128xf32, #tpu.memory_space<vmem>>, vector<1x1x8x16x128xf32>
    %37 = vector.shape_cast %36 : vector<1x1x8x16x128xf32> to vector<8x16x128xf32>
    %38 = vector.shape_cast %37 : vector<8x16x128xf32> to vector<128x128xf32>
    %c5 = arith.constant 5 : index
    %c0_45 = arith.constant 0 : index
    %c0_46 = arith.constant 0 : index
    %39 = vector.load %arg3[%c5, %c0_45, %c0_46] : memref<9x128x128xf32, #tpu.memory_space<vmem>>, vector<1x128x128xf32>
    %40 = vector.shape_cast %39 : vector<1x128x128xf32> to vector<128x128xf32>
    %cst_47 = arith.constant dense<0.000000e+00> : vector<128x128xf32>
    %41 = tpu.matmul %38, %40, %cst_47 {dimension_numbers = #tpu.dot_dimension_numbers<[1], [0], [0], [1], [0, 0, 1, 1], [], []>} : vector<128x128xf32>, vector<128x128xf32>, vector<128x128xf32> -> vector<128x128xf32>
    %42 = arith.addf %35, %41 : vector<128x128xf32>
    %c0_48 = arith.constant 0 : index
    %c0_49 = arith.constant 0 : index
    %c2_50 = arith.constant 2 : index
    %c0_51 = arith.constant 0 : index
    %c0_52 = arith.constant 0 : index
    %43 = vector.load %arg2[%c0_48, %c0_49, %c2_50, %c0_51, %c0_52] : memref<1x1x10x18x128xf32, #tpu.memory_space<vmem>>, vector<1x1x8x16x128xf32>
    %44 = vector.shape_cast %43 : vector<1x1x8x16x128xf32> to vector<8x16x128xf32>
    %45 = vector.shape_cast %44 : vector<8x16x128xf32> to vector<128x128xf32>
    %c6 = arith.constant 6 : index
    %c0_53 = arith.constant 0 : index
    %c0_54 = arith.constant 0 : index
    %46 = vector.load %arg3[%c6, %c0_53, %c0_54] : memref<9x128x128xf32, #tpu.memory_space<vmem>>, vector<1x128x128xf32>
    %47 = vector.shape_cast %46 : vector<1x128x128xf32> to vector<128x128xf32>
    %cst_55 = arith.constant dense<0.000000e+00> : vector<128x128xf32>
    %48 = tpu.matmul %45, %47, %cst_55 {dimension_numbers = #tpu.dot_dimension_numbers<[1], [0], [0], [1], [0, 0, 1, 1], [], []>} : vector<128x128xf32>, vector<128x128xf32>, vector<128x128xf32> -> vector<128x128xf32>
    %49 = arith.addf %42, %48 : vector<128x128xf32>
    %c0_56 = arith.constant 0 : index
    %c0_57 = arith.constant 0 : index
    %c2_58 = arith.constant 2 : index
    %c1_59 = arith.constant 1 : index
    %c0_60 = arith.constant 0 : index
    %50 = vector.load %arg2[%c0_56, %c0_57, %c2_58, %c1_59, %c0_60] : memref<1x1x10x18x128xf32, #tpu.memory_space<vmem>>, vector<1x1x8x16x128xf32>
    %51 = vector.shape_cast %50 : vector<1x1x8x16x128xf32> to vector<8x16x128xf32>
    %52 = vector.shape_cast %51 : vector<8x16x128xf32> to vector<128x128xf32>
    %c7 = arith.constant 7 : index
    %c0_61 = arith.constant 0 : index
    %c0_62 = arith.constant 0 : index
    %53 = vector.load %arg3[%c7, %c0_61, %c0_62] : memref<9x128x128xf32, #tpu.memory_space<vmem>>, vector<1x128x128xf32>
    %54 = vector.shape_cast %53 : vector<1x128x128xf32> to vector<128x128xf32>
    %cst_63 = arith.constant dense<0.000000e+00> : vector<128x128xf32>
    %55 = tpu.matmul %52, %54, %cst_63 {dimension_numbers = #tpu.dot_dimension_numbers<[1], [0], [0], [1], [0, 0, 1, 1], [], []>} : vector<128x128xf32>, vector<128x128xf32>, vector<128x128xf32> -> vector<128x128xf32>
    %56 = arith.addf %49, %55 : vector<128x128xf32>
    %c0_64 = arith.constant 0 : index
    %c0_65 = arith.constant 0 : index
    %c2_66 = arith.constant 2 : index
    %c2_67 = arith.constant 2 : index
    %c0_68 = arith.constant 0 : index
    %57 = vector.load %arg2[%c0_64, %c0_65, %c2_66, %c2_67, %c0_68] : memref<1x1x10x18x128xf32, #tpu.memory_space<vmem>>, vector<1x1x8x16x128xf32>
    %58 = vector.shape_cast %57 : vector<1x1x8x16x128xf32> to vector<8x16x128xf32>
    %59 = vector.shape_cast %58 : vector<8x16x128xf32> to vector<128x128xf32>
    %c8 = arith.constant 8 : index
    %c0_69 = arith.constant 0 : index
    %c0_70 = arith.constant 0 : index
    %60 = vector.load %arg3[%c8, %c0_69, %c0_70] : memref<9x128x128xf32, #tpu.memory_space<vmem>>, vector<1x128x128xf32>
    %61 = vector.shape_cast %60 : vector<1x128x128xf32> to vector<128x128xf32>
    %cst_71 = arith.constant dense<0.000000e+00> : vector<128x128xf32>
    %62 = tpu.matmul %59, %61, %cst_71 {dimension_numbers = #tpu.dot_dimension_numbers<[1], [0], [0], [1], [0, 0, 1, 1], [], []>} : vector<128x128xf32>, vector<128x128xf32>, vector<128x128xf32> -> vector<128x128xf32>
    %63 = arith.addf %56, %62 : vector<128x128xf32>
    %c0_72 = arith.constant 0 : index
    %c0_73 = arith.constant 0 : index
    %64 = vector.load %arg4[%c0_72, %c0_73] : memref<1x128xf32, #tpu.memory_space<vmem>>, vector<1x128xf32>
    %65 = vector.broadcast %64 : vector<1x128xf32> to vector<128x128xf32>
    %66 = arith.addf %63, %65 : vector<128x128xf32>
    %67 = vector.shape_cast %66 : vector<128x128xf32> to vector<8x16x128xf32>
    %c0_74 = arith.constant 0 : index
    %c0_75 = arith.constant 0 : index
    %c0_76 = arith.constant 0 : index
    %c0_77 = arith.constant 0 : index
    %c0_78 = arith.constant 0 : index
    %68 = vector.load %arg5[%c0_74, %c0_75, %c0_76, %c0_77, %c0_78] : memref<1x1x8x16x128xf32, #tpu.memory_space<vmem>>, vector<1x1x8x16x128xf32>
    %69 = vector.shape_cast %68 : vector<1x1x8x16x128xf32> to vector<8x16x128xf32>
    %70 = vector.shape_cast %67 : vector<8x16x128xf32> to vector<1x1x8x16x128xf32>
    tpu.vector_store %arg5[%c0_74, %c0_75, %c0_76, %c0_77, %c0_78], %70 {strides = array<i32>} : memref<1x1x8x16x128xf32, #tpu.memory_space<vmem>>, vector<1x1x8x16x128xf32>,
    return
  }
  func.func @transform_0(%arg0: i32, %arg1: i32) -> (i32, i32, i32, i32, i32) {
    %c0_i32 = arith.constant 0 : i32
    %c0_i32_0 = arith.constant 0 : i32
    %c0_i32_1 = arith.constant 0 : i32
    %c0_i32_2 = arith.constant 0 : i32
    return %arg0, %arg1, %c0_i32, %c0_i32_0, %c0_i32_1 : i32, i32, i32, i32, i32
  }
  func.func @transform_1(%arg0: i32, %arg1: i32) -> (i32, i32, i32) {
    %c0_i32 = arith.constant 0 : i32
    %c0_i32_0 = arith.constant 0 : i32
    %c0_i32_1 = arith.constant 0 : i32
    %c0_i32_2 = arith.constant 0 : i32
    return %c0_i32, %c0_i32_0, %c0_i32_1 : i32, i32, i32
  }
  func.func @transform_2(%arg0: i32, %arg1: i32) -> (i32, i32) {
    %c0_i32 = arith.constant 0 : i32
    %c0_i32_0 = arith.constant 0 : i32
    %c0_i32_1 = arith.constant 0 : i32
    return %c0_i32, %c0_i32_0 : i32, i32
  }
  func.func @transform_3(%arg0: i32, %arg1: i32) -> (i32, i32, i32, i32, i32) {
    %c0_i32 = arith.constant 0 : i32
    %c0_i32_0 = arith.constant 0 : i32
    %c0_i32_1 = arith.constant 0 : i32
    %c0_i32_2 = arith.constant 0 : i32
    return %arg0, %arg1, %c0_i32, %c0_i32_0, %c0_i32_1 : i32, i32, i32, i32, i32
  }
}

</mosaic_0001>

<llo_original>
// kernel: tpu_custom_call.1
$region0: #{tpu_custom_call.1}
  #allocation0 [shape = 'u32[]', space=smem, size = 0x4, offset = 0x4, fixed_abs, tag = 'smem constant byte address 0x4 - core index']
  #allocation1 [shape = 'u32[144,128]{1,0:T(1,128)}', space=vmem, size = 0x12000, scoped, tag = 'internal scratch']
  %s0 = inlined_call_operand.vmem [shape: f32[2,2,10,18,128], index: 0, kind: input, shape index: {}]
  %s1 = inlined_call_operand.vmem [shape: f32[9,128,128], index: 1, kind: input, shape index: {}]
  %s2 = inlined_call_operand.vmem [shape: f32[1,128], index: 2, kind: input, shape index: {}]
  %s3 = inlined_call_operand.hbm [shape: f32[2,2,8,16,128], index: 3, kind: output, shape index: {}]
  %s4 = sld [smem:[#allocation0]]
  $region45: #{tpu_custom_call.1} parent=0
    _
  %s6 = ssub.s32 1, %s4
  %s7 = scalar_select 0, %s6, %s4
  $region1: #{tpu_custom_call.1} parent=0
    #allocation2 [shape = 'u8[131072]{0}', space=vmem, size = 0x20000, scoped, tag = 'output window, operand 0']
    #allocation3 [shape = 's32[2]{0}', space=sflag, size = 0x8, scoped, tag = 'scoped memory for tpu_custom_call.1']
    %8 = vsyncpa [#allocation3], 0
    %s9 = scalar_lea.sflag [#allocation3], 1
    %10 = vsyncpa %s9, 0
    loop: start=0, step=1, limit=6
    $region2: #{tpu_custom_call.1} parent=1 // loop_pre_header
      _
    $region3: #{tpu_custom_call.1} parent=1 // loop_header
      %s12 = sphi 0, %s16
      %p13 = scmp.ge.s32.totalorder %s12, 6
      %s19 = sphi 0, %s31
      %s20 = sphi 0, %s27
      %s21 = sphi 0, %s19
      %s22 = sphi 0, %s20
      %s23 = sphi 0, %s21
      %s24 = sphi 0, %s22
      %s36 = sphi 0, %s38
      %s39 = sphi 0, %s36
      %s40 = sphi 0, %s39
      %s56 = sphi 0, %s40
      %s60 = sphi 0, %s60
      %s62 = sphi 0, %s60
      %s63 = sphi 0, %s62
      %s77 = sphi 0, %s63
      %s81 = sphi 0, %s81
      %s83 = sphi 0, %s81
      %s84 = sphi 0, %s83
      %s98 = sphi 0, %s84
      %s106 = sphi 0, %s108
      %s109 = sphi 0, %s106
      %s110 = sphi 0, %s109
      %s126 = sphi 0, %s110
    $region4: #{tpu_custom_call.1} parent=1 // loop_header_branch
      %15 = sbr.rel (%p13) target = $region8
    $region5: #{tpu_custom_call.1} parent=1 // loop_body
      %s17 = ssub.s32 %s12, 1
      %s18 = ssub.s32 %s12, 2
      %s25 = sadd.s32 1, %s20
      %p26 = scmp.ge.s32.totalorder %s25, 2
      %s27 = scalar_select %p26, 0, %s25
      %s28 = sadd.s32 1, %s19
      %s29 = scalar_select %p26, %s28, %s19
      %p30 = scmp.ge.s32.totalorder %s29, 2
      %s31 = scalar_select %p30, 0, %s29
      %s32 = ssub.s32 %s19, %s31
      %s33 = ssub.s32 %s20, %s27
      %s34 = sor.u32 %s32, %s33
      %p35 = scmp.eq.s32.totalorder %s34, 0
      %s37 = sadd.s32 %s36, 1
      %s38 = scalar_select %p35, %s36, %s37
      %p41 = pneg %p35
      %p42 = scmp.eq.s32.totalorder %s12, 3
      %p43 = por %p41, %p42
      %p44 = scmp.ne.s32.totalorder %s36, %s39
      %p45 = scmp.eq.s32.totalorder %s12, 0
      %p46 = por %p44, %p45
      %p47 = scmp.ne.s32.totalorder %s36, %s39
      %p48 = scmp.eq.s32.totalorder %s17, 3
      %p49 = por %p47, %p48
      %p50 = scmp.ne.s32.totalorder %s39, %s40
      %p51 = scmp.eq.s32.totalorder %s17, 0
      %p52 = por %p50, %p51
      %p53 = scmp.ne.s32.totalorder %s39, %s40
      %p54 = scmp.eq.s32.totalorder %s18, 3
      %p55 = por %p53, %p54
      %p57 = scmp.ne.s32.totalorder %s40, %s56
      %p58 = scmp.eq.s32.totalorder %s18, 0
      %p59 = por %p57, %p58
      %s61 = sadd.s32 %s60, 1
      %p64 = scmp.eq.s32.totalorder %s12, 3
      %p65 = scmp.ne.s32.totalorder %s60, %s62
      %p66 = scmp.eq.s32.totalorder %s12, 0
      %p67 = por %p65, %p66
      %p68 = scmp.ne.s32.totalorder %s60, %s62
      %p69 = scmp.eq.s32.totalorder %s17, 3
      %p70 = por %p68, %p69
      %p71 = scmp.ne.s32.totalorder %s62, %s63
      %p72 = scmp.eq.s32.totalorder %s17, 0
      %p73 = por %p71, %p72
      %p74 = scmp.ne.s32.totalorder %s62, %s63
      %p75 = scmp.eq.s32.totalorder %s18, 3
      %p76 = por %p74, %p75
      %p78 = scmp.ne.s32.totalorder %s63, %s77
      %p79 = scmp.eq.s32.totalorder %s18, 0
      %p80 = por %p78, %p79
      %s82 = sadd.s32 %s81, 1
      %p85 = scmp.eq.s32.totalorder %s12, 3
      %p86 = scmp.ne.s32.totalorder %s81, %s83
      %p87 = scmp.eq.s32.totalorder %s12, 0
      %p88 = por %p86, %p87
      %p89 = scmp.ne.s32.totalorder %s81, %s83
      %p90 = scmp.eq.s32.totalorder %s17, 3
      %p91 = por %p89, %p90
      %p92 = scmp.ne.s32.totalorder %s83, %s84
      %p93 = scmp.eq.s32.totalorder %s17, 0
      %p94 = por %p92, %p93
      %p95 = scmp.ne.s32.totalorder %s83, %s84
      %p96 = scmp.eq.s32.totalorder %s18, 3
      %p97 = por %p95, %p96
      %p99 = scmp.ne.s32.totalorder %s84, %s98
      %p100 = scmp.eq.s32.totalorder %s18, 0
      %p101 = por %p99, %p100
      %s102 = ssub.s32 %s19, %s31
      %s103 = ssub.s32 %s20, %s27
      %s104 = sor.u32 %s102, %s103
      %p105 = scmp.eq.s32.totalorder %s104, 0
      %s107 = sadd.s32 %s106, 1
      %s108 = scalar_select %p105, %s106, %s107
      %p111 = pneg %p105
      %p112 = scmp.eq.s32.totalorder %s12, 3
      %p113 = por %p111, %p112
      %p114 = scmp.ne.s32.totalorder %s106, %s109
      %p115 = scmp.eq.s32.totalorder %s12, 0
      %p116 = por %p114, %p115
      %p117 = scmp.ne.s32.totalorder %s106, %s109
      %p118 = scmp.eq.s32.totalorder %s17, 3
      %p119 = por %p117, %p118
      %p120 = scmp.ne.s32.totalorder %s109, %s110
      %p121 = scmp.eq.s32.totalorder %s17, 0
      %p122 = por %p120, %p121
      %p123 = scmp.ne.s32.totalorder %s109, %s110
      %p124 = scmp.eq.s32.totalorder %s18, 3
      %p125 = por %p123, %p124
      %p127 = scmp.ne.s32.totalorder %s110, %s126
      %p128 = scmp.eq.s32.totalorder %s18, 0
      %p129 = por %p127, %p128
      %p130 = scmp.le.s32.totalorder 1, %s12
      %p131 = scmp.lt.s32.totalorder %s12, 5
      %p132 = pnand %p130, %p131
      %p133 = pneg %p132
      // Predicated region
      $region9: #{tpu_custom_call.1} parent=5 // pred_check
        _
      $region10: #{tpu_custom_call.1} parent=5 // pred_check_branch
        %135 = sbr.rel (%p132) target = $region12
      $region11: #{tpu_custom_call.1} parent=5 // pred_region
        %s136 = ssub.s32 %s12, 1
        // Predicated region
        $region13: #{tpu_custom_call.1} parent=11 // pred_check
          %p137 = pneg %p73
        $region14: #{tpu_custom_call.1} parent=11 // pred_check_branch
          %139 = sbr.rel (%p137) target = $region16
        $region15: #{tpu_custom_call.1} parent=11 // pred_region
          _
        $region16: #{tpu_custom_call.1} parent=11 // pred_fallthru
          _
        // Predicated region
        $region17: #{tpu_custom_call.1} parent=11 // pred_check
          %p140 = pneg %p94
        $region18: #{tpu_custom_call.1} parent=11 // pred_check_branch
          %142 = sbr.rel (%p140) target = $region20
        $region19: #{tpu_custom_call.1} parent=11 // pred_region
          _
        $region20: #{tpu_custom_call.1} parent=11 // pred_fallthru
          _
      $region12: #{tpu_custom_call.1} parent=5 // pred_fallthru
        _
      %p143 = scmp.lt.s32.totalorder %s12, 4
      // Predicated region
      $region21: #{tpu_custom_call.1} parent=5 // pred_check
        %p144 = pneg %p143
      $region22: #{tpu_custom_call.1} parent=5 // pred_check_branch
        %146 = sbr.rel (%p144) target = $region24
      $region23: #{tpu_custom_call.1} parent=5 // pred_region
        // Predicated region
        $region25: #{tpu_custom_call.1} parent=23 // pred_check
          %p147 = pneg %p46
        $region26: #{tpu_custom_call.1} parent=23 // pred_check_branch
          %149 = sbr.rel (%p147) target = $region28
        $region27: #{tpu_custom_call.1} parent=23 // pred_region
          %p150 = scmp.lt.s32.totalorder %s19, 1
          %s151 = scalar_select %p150, %s19, 1
          %p152 = scmp.lt.s32.totalorder %s20, 1
          %s153 = scalar_select %p152, %s20, 1
          %s154 = smul.addr %s153, 30
          %s155 = smul.addr %s151, 60
          %s156 = sadd.s32 %s154, %s155
          %s157 = smul.addr %s156, 8
          %s158 = scalar_lea.vmem %s0, %s157
        $region28: #{tpu_custom_call.1} parent=23 // pred_fallthru
          _
      $region24: #{tpu_custom_call.1} parent=5 // pred_fallthru
        _
      %p159 = scmp.le.s32.totalorder 1, %s12
      %p160 = scmp.lt.s32.totalorder %s12, 5
      %p161 = pnand %p159, %p160
      %p162 = pneg %p161
      // Predicated region
      $region29: #{tpu_custom_call.1} parent=5 // pred_check
        _
      $region30: #{tpu_custom_call.1} parent=5 // pred_check_branch
        %164 = sbr.rel (%p161) target = $region32
      $region31: #{tpu_custom_call.1} parent=5 // pred_region
        %s165 = ssub.s32 %s12, 1
        %p166 = scmp.lt.s32.totalorder %s21, 1
        %s167 = scalar_select %p166, %s21, 1
        %p168 = scmp.lt.s32.totalorder %s22, 1
        %s169 = scalar_select %p168, %s22, 1
        %s170 = smul.addr %s169, 30
        %s171 = smul.addr %s167, 60
        %s172 = sadd.s32 %s170, %s171
        %s173 = smul.addr %s172, 8
        %s174 = scalar_lea.vmem %s0, %s173
        %p175 = pneg %p52
        %p176 = pneg %p49
        %p177 = pneg %p73
        %p178 = pneg %p70
        %p179 = pneg %p94
        %p180 = pneg %p91
        %p181 = pneg %p122
        %p182 = pneg %p119
        %s183 = sand.u32 %s109, 1
        %s184 = scalar_lea.sflag [#allocation3], %s183
        %s185 = sand.u32 %s109, 1
        %s186 = smul.addr %s185, 128
        %s187 = scalar_lea.vmem [#allocation2], %s186
        %p188 = scmp.lt.s32.totalorder %s21, 1
        %s189 = scalar_select %p188, %s21, 1
        %p190 = scmp.lt.s32.totalorder %s22, 1
        %s191 = scalar_select %p190, %s22, 1
        %s192 = smul.addr %s191, 30
        %s193 = smul.addr %s189, 60
        %s194 = sadd.s32 %s192, %s193
        %s195 = smul.addr %s194, 8
        %s196 = scalar_lea.vmem %s0, %s195
        %v197 = vld [vmem:[%s196] sm:$0xff]
        %v198 = vld [vmem:[%s196 + $0x8] sm:$0xff]
        %v199 = vld [vmem:[%s196 + $0x18] sm:$0xff]
        %v200 = vld [vmem:[%s196 + $0x20] sm:$0xff]
        %v201 = vld [vmem:[%s196 + $0x30] sm:$0xff]
        %v202 = vld [vmem:[%s196 + $0x38] sm:$0xff]
        %v203 = vld [vmem:[%s196 + $0x48] sm:$0xff]
        %v204 = vld [vmem:[%s196 + $0x50] sm:$0xff]
        %v205 = vld [vmem:[%s196 + $0x60] sm:$0xff]
        %v206 = vld [vmem:[%s196 + $0x68] sm:$0xff]
        %v207 = vld [vmem:[%s196 + $0x78] sm:$0xff]
        %v208 = vld [vmem:[%s196 + $0x80] sm:$0xff]
        %v209 = vld [vmem:[%s196 + $0x90] sm:$0xff]
        %v210 = vld [vmem:[%s196 + $0x98] sm:$0xff]
        %v211 = vld [vmem:[%s196 + $0xa8] sm:$0xff]
        %v212 = vld [vmem:[%s196 + $0xb0] sm:$0xff]
        %v213 = vld [vmem:[%s1] sm:$0xff]
        %v214 = vld [vmem:[%s1 + $0x8] sm:$0xff]
        %v215 = vld [vmem:[%s1 + $0x10] sm:$0xff]
        %v216 = vld [vmem:[%s1 + $0x18] sm:$0xff]
        %v217 = vld [vmem:[%s1 + $0x20] sm:$0xff]
        %v218 = vld [vmem:[%s1 + $0x28] sm:$0xff]
        %v219 = vld [vmem:[%s1 + $0x30] sm:$0xff]
        %v220 = vld [vmem:[%s1 + $0x38] sm:$0xff]
        %v221 = vld [vmem:[%s1 + $0x40] sm:$0xff]
        %v222 = vld [vmem:[%s1 + $0x48] sm:$0xff]
        %v223 = vld [vmem:[%s1 + $0x50] sm:$0xff]
        %v224 = vld [vmem:[%s1 + $0x58] sm:$0xff]
        %v225 = vld [vmem:[%s1 + $0x60] sm:$0xff]
        %v226 = vld [vmem:[%s1 + $0x68] sm:$0xff]
        %v227 = vld [vmem:[%s1 + $0x70] sm:$0xff]
        %v228 = vld [vmem:[%s1 + $0x78] sm:$0xff]
        %v229 = vld [vmem:[%s196 + $0x1] sm:$0xff]
        %v230 = vld [vmem:[%s196 + $0x9] sm:$0xff]
        %v231 = vld [vmem:[%s196 + $0x19] sm:$0xff]
        %v232 = vld [vmem:[%s196 + $0x21] sm:$0xff]
        %v233 = vld [vmem:[%s196 + $0x31] sm:$0xff]
        %v234 = vld [vmem:[%s196 + $0x39] sm:$0xff]
        %v235 = vld [vmem:[%s196 + $0x49] sm:$0xff]
        %v236 = vld [vmem:[%s196 + $0x51] sm:$0xff]
        %v237 = vld [vmem:[%s196 + $0x61] sm:$0xff]
        %v238 = vld [vmem:[%s196 + $0x69] sm:$0xff]
        %v239 = vld [vmem:[%s196 + $0x79] sm:$0xff]
        %v240 = vld [vmem:[%s196 + $0x81] sm:$0xff]
        %v241 = vld [vmem:[%s196 + $0x91] sm:$0xff]
        %v242 = vld [vmem:[%s196 + $0x99] sm:$0xff]
        %v243 = vld [vmem:[%s196 + $0xa9] sm:$0xff]
        %v244 = vld [vmem:[%s196 + $0xb1] sm:$0xff]
        %s245 = scalar_lea.vmem %s1, 128
        %v246 = vld [vmem:[%s245] sm:$0xff]
        %v247 = vld [vmem:[%s245 + $0x8] sm:$0xff]
        %v248 = vld [vmem:[%s245 + $0x10] sm:$0xff]
        %v249 = vld [vmem:[%s245 + $0x18] sm:$0xff]
        %v250 = vld [vmem:[%s245 + $0x20] sm:$0xff]
        %v251 = vld [vmem:[%s245 + $0x28] sm:$0xff]
        %v252 = vld [vmem:[%s245 + $0x30] sm:$0xff]
        %v253 = vld [vmem:[%s245 + $0x38] sm:$0xff]
        %v254 = vld [vmem:[%s245 + $0x40] sm:$0xff]
        %v255 = vld [vmem:[%s245 + $0x48] sm:$0xff]
        %v256 = vld [vmem:[%s245 + $0x50] sm:$0xff]
        %v257 = vld [vmem:[%s245 + $0x58] sm:$0xff]
        %v258 = vld [vmem:[%s245 + $0x60] sm:$0xff]
        %v259 = vld [vmem:[%s245 + $0x68] sm:$0xff]
        %v260 = vld [vmem:[%s245 + $0x70] sm:$0xff]
        %v261 = vld [vmem:[%s245 + $0x78] sm:$0xff]
        %262 = vmatprep.subr.mxu0 0.0
        %263 = vmatpush1.msra.mxu0 %v261
        %264 = vmatprep.subr.mxu0 0.0
        %265 = vmatpush1.msra.mxu0 %v260
        %266 = vmatprep.subr.mxu0 0.0
        %267 = vmatpush1.msra.mxu0 %v259
        %268 = vmatprep.subr.mxu0 0.0
        %269 = vmatpush1.msra.mxu0 %v258
        %270 = vmatprep.subr.mxu0 0.0
        %271 = vmatpush1.msra.mxu0 %v257
        %272 = vmatprep.subr.mxu0 0.0
        %273 = vmatpush1.msra.mxu0 %v256
        %274 = vmatprep.subr.mxu0 0.0
        %275 = vmatpush1.msra.mxu0 %v255
        %276 = vmatprep.subr.mxu0 0.0
        %277 = vmatpush1.msra.mxu0 %v254
        %278 = vmatprep.subr.mxu0 0.0
        %279 = vmatpush1.msra.mxu0 %v253
        %280 = vmatprep.subr.mxu0 0.0
        %281 = vmatpush1.msra.mxu0 %v252
        %282 = vmatprep.subr.mxu0 0.0
        %283 = vmatpush1.msra.mxu0 %v251
        %284 = vmatprep.subr.mxu0 0.0
        %285 = vmatpush1.msra.mxu0 %v250
        %286 = vmatprep.subr.mxu0 0.0
        %287 = vmatpush1.msra.mxu0 %v249
        %288 = vmatprep.subr.mxu0 0.0
        %289 = vmatpush1.msra.mxu0 %v248
        %290 = vmatprep.subr.mxu0 0.0
        %291 = vmatpush1.msra.mxu0 %v247
        %292 = vmatprep.subr.mxu0 0.0
        %293 = vmatpush1.msra.mxu0 %v246
        %294 = vmatprep.subr.mxu0 0.0
        %295 = vmatpush2.msra.mxu0 0.0
        %296 = vmatprep.subr.mxu0 0.0
        %297 = vmatpush2.msra.mxu0 0.0
        %298 = vmatprep.subr.mxu0 0.0
        %299 = vmatpush2.msra.mxu0 0.0
        %300 = vmatprep.subr.mxu0 0.0
        %301 = vmatpush2.msra.mxu0 0.0
        %302 = vmatprep.subr.mxu0 0.0
        %303 = vmatpush2.msra.mxu0 0.0
        %304 = vmatprep.subr.mxu0 0.0
        %305 = vmatpush2.msra.mxu0 0.0
        %306 = vmatprep.subr.mxu0 0.0
        %307 = vmatpush2.msra.mxu0 0.0
        %308 = vmatprep.subr.mxu0 0.0
        %309 = vmatpush2.msra.mxu0 0.0
        %310 = vmatprep.subr.mxu0 0.0
        %311 = vmatpush2.msra.mxu0 0.0
        %312 = vmatprep.subr.mxu0 0.0
        %313 = vmatpush2.msra.mxu0 0.0
        %314 = vmatprep.subr.mxu0 0.0
        %315 = vmatpush2.msra.mxu0 0.0
        %316 = vmatprep.subr.mxu0 0.0
        %317 = vmatpush2.msra.mxu0 0.0
        %318 = vmatprep.subr.mxu0 0.0
        %319 = vmatpush2.msra.mxu0 0.0
        %320 = vmatprep.subr.mxu0 0.0
        %321 = vmatpush2.msra.mxu0 0.0
        %322 = vmatprep.subr.mxu0 0.0
        %323 = vmatpush2.msra.mxu0 0.0
        %324 = vmatprep.subr.mxu0 0.0
        %325 = vmatpush2.msra.mxu0 0.0
        %326 = vmatprep.mubr.f32.mxu0 0.0
        %327 = vmatmul.mubr.f32.gmra.mxu0 %v229
        %v328 = vpop.f32.mrf.mxu0
        %v329 = vadd.f32 0.0, %v328
        %v330 = vpop.f32.mrf.mxu0
        %331 = vmatprep.mubr.f32.mxu0 0.0
        %332 = vmatmul.mubr.f32.gmra.mxu0 %v230
        %v333 = vpop.f32.mrf.mxu0
        %v334 = vadd.f32 0.0, %v333
        %v335 = vpop.f32.mrf.mxu0
        %336 = vmatprep.mubr.f32.mxu0 0.0
        %337 = vmatmul.mubr.f32.gmra.mxu0 %v231
        %v338 = vpop.f32.mrf.mxu0
        %v339 = vadd.f32 0.0, %v338
        %v340 = vpop.f32.mrf.mxu0
        %341 = vmatprep.mubr.f32.mxu0 0.0
        %342 = vmatmul.mubr.f32.gmra.mxu0 %v232
        %v343 = vpop.f32.mrf.mxu0
        %v344 = vadd.f32 0.0, %v343
        %v345 = vpop.f32.mrf.mxu0
        %346 = vmatprep.mubr.f32.mxu0 0.0
        %347 = vmatmul.mubr.f32.gmra.mxu0 %v233
        %v348 = vpop.f32.mrf.mxu0
        %v349 = vadd.f32 0.0, %v348
        %v350 = vpop.f32.mrf.mxu0
        %351 = vmatprep.mubr.f32.mxu0 0.0
        %352 = vmatmul.mubr.f32.gmra.mxu0 %v234
        %v353 = vpop.f32.mrf.mxu0
        %v354 = vadd.f32 0.0, %v353
        %v355 = vpop.f32.mrf.mxu0
        %356 = vmatprep.mubr.f32.mxu0 0.0
        %357 = vmatmul.mubr.f32.gmra.mxu0 %v235
        %v358 = vpop.f32.mrf.mxu0
        %v359 = vadd.f32 0.0, %v358
        %v360 = vpop.f32.mrf.mxu0
        %361 = vmatprep.mubr.f32.mxu0 0.0
        %362 = vmatmul.mubr.f32.gmra.mxu0 %v236
        %v363 = vpop.f32.mrf.mxu0
        %v364 = vadd.f32 0.0, %v363
        %v365 = vpop.f32.mrf.mxu0
        %366 = vmatprep.mubr.f32.mxu0 0.0
        %367 = vmatmul.mubr.f32.gmra.mxu0 %v237
        %v368 = vpop.f32.mrf.mxu0
        %v369 = vadd.f32 0.0, %v368
        %v370 = vpop.f32.mrf.mxu0
        %371 = vmatprep.mubr.f32.mxu0 0.0
        %372 = vmatmul.mubr.f32.gmra.mxu0 %v238
        %v373 = vpop.f32.mrf.mxu0
        %v374 = vadd.f32 0.0, %v373
        %v375 = vpop.f32.mrf.mxu0
        %376 = vmatprep.mubr.f32.mxu0 0.0
        %377 = vmatmul.mubr.f32.gmra.mxu0 %v239
        %v378 = vpop.f32.mrf.mxu0
        %v379 = vadd.f32 0.0, %v378
        %v380 = vpop.f32.mrf.mxu0
        %381 = vmatprep.mubr.f32.mxu0 0.0
        %382 = vmatmul.mubr.f32.gmra.mxu0 %v240
        %v383 = vpop.f32.mrf.mxu0
        %v384 = vadd.f32 0.0, %v383
        %v385 = vpop.f32.mrf.mxu0
        %386 = vmatprep.mubr.f32.mxu0 0.0
        %387 = vmatmul.mubr.f32.gmra.mxu0 %v241
        %v388 = vpop.f32.mrf.mxu0
        %v389 = vadd.f32 0.0, %v388
        %v390 = vpop.f32.mrf.mxu0
        %391 = vmatprep.mubr.f32.mxu0 0.0
        %392 = vmatmul.mubr.f32.gmra.mxu0 %v242
        %v393 = vpop.f32.mrf.mxu0
        %v394 = vadd.f32 0.0, %v393
        %v395 = vpop.f32.mrf.mxu0
        %396 = vmatprep.mubr.f32.mxu0 0.0
        %397 = vmatmul.mubr.f32.gmra.mxu0 %v243
        %v398 = vpop.f32.mrf.mxu0
        %v399 = vadd.f32 0.0, %v398
        %v400 = vpop.f32.mrf.mxu0
        %401 = vmatprep.mubr.f32.mxu0 0.0
        %402 = vmatmul.mubr.f32.gmra.mxu0 %v244
        %v403 = vpop.f32.mrf.mxu0
        %v404 = vadd.f32 0.0, %v403
        %v405 = vpop.f32.mrf.mxu0
        %406 = vdwg.mxu0
        %407 = vmatprep.subr.mxu0 0.0
        %408 = vmatpush1.msra.mxu0 %v228
        %409 = vmatprep.subr.mxu0 0.0
        %410 = vmatpush1.msra.mxu0 %v227
        %411 = vmatprep.subr.mxu0 0.0
        %412 = vmatpush1.msra.mxu0 %v226
        %413 = vmatprep.subr.mxu0 0.0
        %414 = vmatpush1.msra.mxu0 %v225
        %415 = vmatprep.subr.mxu0 0.0
        %416 = vmatpush1.msra.mxu0 %v224
        %417 = vmatprep.subr.mxu0 0.0
        %418 = vmatpush1.msra.mxu0 %v223
        %419 = vmatprep.subr.mxu0 0.0
        %420 = vmatpush1.msra.mxu0 %v222
        %421 = vmatprep.subr.mxu0 0.0
        %422 = vmatpush1.msra.mxu0 %v221
        %423 = vmatprep.subr.mxu0 0.0
        %424 = vmatpush1.msra.mxu0 %v220
        %425 = vmatprep.subr.mxu0 0.0
        %426 = vmatpush1.msra.mxu0 %v219
        %427 = vmatprep.subr.mxu0 0.0
        %428 = vmatpush1.msra.mxu0 %v218
        %429 = vmatprep.subr.mxu0 0.0
        %430 = vmatpush1.msra.mxu0 %v217
        %431 = vmatprep.subr.mxu0 0.0
        %432 = vmatpush1.msra.mxu0 %v216
        %433 = vmatprep.subr.mxu0 0.0
        %434 = vmatpush1.msra.mxu0 %v215
        %435 = vmatprep.subr.mxu0 0.0
        %436 = vmatpush1.msra.mxu0 %v214
        %437 = vmatprep.subr.mxu0 0.0
        %438 = vmatpush1.msra.mxu0 %v213
        %439 = vmatprep.subr.mxu0 0.0
        %440 = vmatpush2.msra.mxu0 0.0
        %441 = vmatprep.subr.mxu0 0.0
        %442 = vmatpush2.msra.mxu0 0.0
        %443 = vmatprep.subr.mxu0 0.0
        %444 = vmatpush2.msra.mxu0 0.0
        %445 = vmatprep.subr.mxu0 0.0
        %446 = vmatpush2.msra.mxu0 0.0
        %447 = vmatprep.subr.mxu0 0.0
        %448 = vmatpush2.msra.mxu0 0.0
        %449 = vmatprep.subr.mxu0 0.0
        %450 = vmatpush2.msra.mxu0 0.0
        %451 = vmatprep.subr.mxu0 0.0
        %452 = vmatpush2.msra.mxu0 0.0
        %453 = vmatprep.subr.mxu0 0.0
        %454 = vmatpush2.msra.mxu0 0.0
        %455 = vmatprep.subr.mxu0 0.0
        %456 = vmatpush2.msra.mxu0 0.0
        %457 = vmatprep.subr.mxu0 0.0
        %458 = vmatpush2.msra.mxu0 0.0
        %459 = vmatprep.subr.mxu0 0.0
        %460 = vmatpush2.msra.mxu0 0.0
        %461 = vmatprep.subr.mxu0 0.0
        %462 = vmatpush2.msra.mxu0 0.0
        %463 = vmatprep.subr.mxu0 0.0
        %464 = vmatpush2.msra.mxu0 0.0
        %465 = vmatprep.subr.mxu0 0.0
        %466 = vmatpush2.msra.mxu0 0.0
        %467 = vmatprep.subr.mxu0 0.0
        %468 = vmatpush2.msra.mxu0 0.0
        %469 = vmatprep.subr.mxu0 0.0
        %470 = vmatpush2.msra.mxu0 0.0
        %471 = vmatprep.mubr.f32.mxu0 0.0
        %472 = vmatmul.mubr.f32.gmra.mxu0 %v197
        %v473 = vpop.f32.mrf.mxu0
        %v474 = vadd.f32 %v329, %v473
        %v475 = vpop.f32.mrf.mxu0
        %476 = vmatprep.mubr.f32.mxu0 0.0
        %477 = vmatmul.mubr.f32.gmra.mxu0 %v198
        %v478 = vpop.f32.mrf.mxu0
        %v479 = vadd.f32 %v334, %v478
        %v480 = vpop.f32.mrf.mxu0
        %481 = vmatprep.mubr.f32.mxu0 0.0
        %482 = vmatmul.mubr.f32.gmra.mxu0 %v199
        %v483 = vpop.f32.mrf.mxu0
        %v484 = vadd.f32 %v339, %v483
        %v485 = vpop.f32.mrf.mxu0
        %486 = vmatprep.mubr.f32.mxu0 0.0
        %487 = vmatmul.mubr.f32.gmra.mxu0 %v200
        %v488 = vpop.f32.mrf.mxu0
        %v489 = vadd.f32 %v344, %v488
        %v490 = vpop.f32.mrf.mxu0
        %491 = vmatprep.mubr.f32.mxu0 0.0
        %492 = vmatmul.mubr.f32.gmra.mxu0 %v201
        %v493 = vpop.f32.mrf.mxu0
        %v494 = vadd.f32 %v349, %v493
        %v495 = vpop.f32.mrf.mxu0
        %496 = vmatprep.mubr.f32.mxu0 0.0
        %497 = vmatmul.mubr.f32.gmra.mxu0 %v202
        %v498 = vpop.f32.mrf.mxu0
        %v499 = vadd.f32 %v354, %v498
        %v500 = vpop.f32.mrf.mxu0
        %501 = vmatprep.mubr.f32.mxu0 0.0
        %502 = vmatmul.mubr.f32.gmra.mxu0 %v203
        %v503 = vpop.f32.mrf.mxu0
        %v504 = vadd.f32 %v359, %v503
        %v505 = vpop.f32.mrf.mxu0
        %506 = vmatprep.mubr.f32.mxu0 0.0
        %507 = vmatmul.mubr.f32.gmra.mxu0 %v204
        %v508 = vpop.f32.mrf.mxu0
        %v509 = vadd.f32 %v364, %v508
        %v510 = vpop.f32.mrf.mxu0
        %511 = vmatprep.mubr.f32.mxu0 0.0
        %512 = vmatmul.mubr.f32.gmra.mxu0 %v205
        %v513 = vpop.f32.mrf.mxu0
        %v514 = vadd.f32 %v369, %v513
        %v515 = vpop.f32.mrf.mxu0
        %516 = vmatprep.mubr.f32.mxu0 0.0
        %517 = vmatmul.mubr.f32.gmra.mxu0 %v206
        %v518 = vpop.f32.mrf.mxu0
        %v519 = vadd.f32 %v374, %v518
        %v520 = vpop.f32.mrf.mxu0
        %521 = vmatprep.mubr.f32.mxu0 0.0
        %522 = vmatmul.mubr.f32.gmra.mxu0 %v207
        %v523 = vpop.f32.mrf.mxu0
        %v524 = vadd.f32 %v379, %v523
        %v525 = vpop.f32.mrf.mxu0
        %526 = vmatprep.mubr.f32.mxu0 0.0
        %527 = vmatmul.mubr.f32.gmra.mxu0 %v208
        %v528 = vpop.f32.mrf.mxu0
        %v529 = vadd.f32 %v384, %v528
        %v530 = vpop.f32.mrf.mxu0
        %531 = vmatprep.mubr.f32.mxu0 0.0
        %532 = vmatmul.mubr.f32.gmra.mxu0 %v209
        %v533 = vpop.f32.mrf.mxu0
        %v534 = vadd.f32 %v389, %v533
        %v535 = vpop.f32.mrf.mxu0
        %536 = vmatprep.mubr.f32.mxu0 0.0
        %537 = vmatmul.mubr.f32.gmra.mxu0 %v210
        %v538 = vpop.f32.mrf.mxu0
        %v539 = vadd.f32 %v394, %v538
        %v540 = vpop.f32.mrf.mxu0
        %541 = vmatprep.mubr.f32.mxu0 0.0
        %542 = vmatmul.mubr.f32.gmra.mxu0 %v211
        %v543 = vpop.f32.mrf.mxu0
        %v544 = vadd.f32 %v399, %v543
        %v545 = vpop.f32.mrf.mxu0
        %546 = vmatprep.mubr.f32.mxu0 0.0
        %547 = vmatmul.mubr.f32.gmra.mxu0 %v212
        %v548 = vpop.f32.mrf.mxu0
        %v549 = vadd.f32 %v404, %v548
        %v550 = vpop.f32.mrf.mxu0
        %551 = vdwg.mxu0
        %v552 = vld [vmem:[%s196 + $0x2] sm:$0xff]
        %v553 = vld [vmem:[%s196 + $0xa] sm:$0xff]
        %v554 = vld [vmem:[%s196 + $0x1a] sm:$0xff]
        %v555 = vld [vmem:[%s196 + $0x22] sm:$0xff]
        %v556 = vld [vmem:[%s196 + $0x32] sm:$0xff]
        %v557 = vld [vmem:[%s196 + $0x3a] sm:$0xff]
        %v558 = vld [vmem:[%s196 + $0x4a] sm:$0xff]
        %v559 = vld [vmem:[%s196 + $0x52] sm:$0xff]
        %v560 = vld [vmem:[%s196 + $0x62] sm:$0xff]
        %v561 = vld [vmem:[%s196 + $0x6a] sm:$0xff]
        %v562 = vld [vmem:[%s196 + $0x7a] sm:$0xff]
        %v563 = vld [vmem:[%s196 + $0x82] sm:$0xff]
        %v564 = vld [vmem:[%s196 + $0x92] sm:$0xff]
        %v565 = vld [vmem:[%s196 + $0x9a] sm:$0xff]
        %v566 = vld [vmem:[%s196 + $0xaa] sm:$0xff]
        %v567 = vld [vmem:[%s196 + $0xb2] sm:$0xff]
        %s568 = scalar_lea.vmem %s1, 256
        %v569 = vld [vmem:[%s568] sm:$0xff]
        %v570 = vld [vmem:[%s568 + $0x8] sm:$0xff]
        %v571 = vld [vmem:[%s568 + $0x10] sm:$0xff]
        %v572 = vld [vmem:[%s568 + $0x18] sm:$0xff]
        %v573 = vld [vmem:[%s568 + $0x20] sm:$0xff]
        %v574 = vld [vmem:[%s568 + $0x28] sm:$0xff]
        %v575 = vld [vmem:[%s568 + $0x30] sm:$0xff]
        %v576 = vld [vmem:[%s568 + $0x38] sm:$0xff]
        %v577 = vld [vmem:[%s568 + $0x40] sm:$0xff]
        %v578 = vld [vmem:[%s568 + $0x48] sm:$0xff]
        %v579 = vld [vmem:[%s568 + $0x50] sm:$0xff]
        %v580 = vld [vmem:[%s568 + $0x58] sm:$0xff]
        %v581 = vld [vmem:[%s568 + $0x60] sm:$0xff]
        %v582 = vld [vmem:[%s568 + $0x68] sm:$0xff]
        %v583 = vld [vmem:[%s568 + $0x70] sm:$0xff]
        %v584 = vld [vmem:[%s568 + $0x78] sm:$0xff]
        %585 = vmatprep.subr.mxu0 0.0
        %586 = vmatpush1.msra.mxu0 %v584
        %587 = vmatprep.subr.mxu0 0.0
        %588 = vmatpush1.msra.mxu0 %v583
        %589 = vmatprep.subr.mxu0 0.0
        %590 = vmatpush1.msra.mxu0 %v582
        %591 = vmatprep.subr.mxu0 0.0
        %592 = vmatpush1.msra.mxu0 %v581
        %593 = vmatprep.subr.mxu0 0.0
        %594 = vmatpush1.msra.mxu0 %v580
        %595 = vmatprep.subr.mxu0 0.0
        %596 = vmatpush1.msra.mxu0 %v579
        %597 = vmatprep.subr.mxu0 0.0
        %598 = vmatpush1.msra.mxu0 %v578
        %599 = vmatprep.subr.mxu0 0.0
        %600 = vmatpush1.msra.mxu0 %v577
        %601 = vmatprep.subr.mxu0 0.0
        %602 = vmatpush1.msra.mxu0 %v576
        %603 = vmatprep.subr.mxu0 0.0
        %604 = vmatpush1.msra.mxu0 %v575
        %605 = vmatprep.subr.mxu0 0.0
        %606 = vmatpush1.msra.mxu0 %v574
        %607 = vmatprep.subr.mxu0 0.0
        %608 = vmatpush1.msra.mxu0 %v573
        %609 = vmatprep.subr.mxu0 0.0
        %610 = vmatpush1.msra.mxu0 %v572
        %611 = vmatprep.subr.mxu0 0.0
        %612 = vmatpush1.msra.mxu0 %v571
        %613 = vmatprep.subr.mxu0 0.0
        %614 = vmatpush1.msra.mxu0 %v570
        %615 = vmatprep.subr.mxu0 0.0
        %616 = vmatpush1.msra.mxu0 %v569
        %617 = vmatprep.subr.mxu0 0.0
        %618 = vmatpush2.msra.mxu0 0.0
        %619 = vmatprep.subr.mxu0 0.0
        %620 = vmatpush2.msra.mxu0 0.0
        %621 = vmatprep.subr.mxu0 0.0
        %622 = vmatpush2.msra.mxu0 0.0
        %623 = vmatprep.subr.mxu0 0.0
        %624 = vmatpush2.msra.mxu0 0.0
        %625 = vmatprep.subr.mxu0 0.0
        %626 = vmatpush2.msra.mxu0 0.0
        %627 = vmatprep.subr.mxu0 0.0
        %628 = vmatpush2.msra.mxu0 0.0
        %629 = vmatprep.subr.mxu0 0.0
        %630 = vmatpush2.msra.mxu0 0.0
        %631 = vmatprep.subr.mxu0 0.0
        %632 = vmatpush2.msra.mxu0 0.0
        %633 = vmatprep.subr.mxu0 0.0
        %634 = vmatpush2.msra.mxu0 0.0
        %635 = vmatprep.subr.mxu0 0.0
        %636 = vmatpush2.msra.mxu0 0.0
        %637 = vmatprep.subr.mxu0 0.0
        %638 = vmatpush2.msra.mxu0 0.0
        %639 = vmatprep.subr.mxu0 0.0
        %640 = vmatpush2.msra.mxu0 0.0
        %641 = vmatprep.subr.mxu0 0.0
        %642 = vmatpush2.msra.mxu0 0.0
        %643 = vmatprep.subr.mxu0 0.0
        %644 = vmatpush2.msra.mxu0 0.0
        %645 = vmatprep.subr.mxu0 0.0
        %646 = vmatpush2.msra.mxu0 0.0
        %647 = vmatprep.subr.mxu0 0.0
        %648 = vmatpush2.msra.mxu0 0.0
        %649 = vmatprep.mubr.f32.mxu0 0.0
        %650 = vmatmul.mubr.f32.gmra.mxu0 %v552
        %v651 = vpop.f32.mrf.mxu0
        %v652 = vadd.f32 0.0, %v651
        %v653 = vpop.f32.mrf.mxu0
        %654 = vmatprep.mubr.f32.mxu0 0.0
        %655 = vmatmul.mubr.f32.gmra.mxu0 %v553
        %v656 = vpop.f32.mrf.mxu0
        %v657 = vadd.f32 0.0, %v656
        %v658 = vpop.f32.mrf.mxu0
        %659 = vmatprep.mubr.f32.mxu0 0.0
        %660 = vmatmul.mubr.f32.gmra.mxu0 %v554
        %v661 = vpop.f32.mrf.mxu0
        %v662 = vadd.f32 0.0, %v661
        %v663 = vpop.f32.mrf.mxu0
        %664 = vmatprep.mubr.f32.mxu0 0.0
        %665 = vmatmul.mubr.f32.gmra.mxu0 %v555
        %v666 = vpop.f32.mrf.mxu0
        %v667 = vadd.f32 0.0, %v666
        %v668 = vpop.f32.mrf.mxu0
        %669 = vmatprep.mubr.f32.mxu0 0.0
        %670 = vmatmul.mubr.f32.gmra.mxu0 %v556
        %v671 = vpop.f32.mrf.mxu0
        %v672 = vadd.f32 0.0, %v671
        %v673 = vpop.f32.mrf.mxu0
        %674 = vmatprep.mubr.f32.mxu0 0.0
        %675 = vmatmul.mubr.f32.gmra.mxu0 %v557
        %v676 = vpop.f32.mrf.mxu0
        %v677 = vadd.f32 0.0, %v676
        %v678 = vpop.f32.mrf.mxu0
        %679 = vmatprep.mubr.f32.mxu0 0.0
        %680 = vmatmul.mubr.f32.gmra.mxu0 %v558
        %v681 = vpop.f32.mrf.mxu0
        %v682 = vadd.f32 0.0, %v681
        %v683 = vpop.f32.mrf.mxu0
        %684 = vmatprep.mubr.f32.mxu0 0.0
        %685 = vmatmul.mubr.f32.gmra.mxu0 %v559
        %v686 = vpop.f32.mrf.mxu0
        %v687 = vadd.f32 0.0, %v686
        %v688 = vpop.f32.mrf.mxu0
        %689 = vmatprep.mubr.f32.mxu0 0.0
        %690 = vmatmul.mubr.f32.gmra.mxu0 %v560
        %v691 = vpop.f32.mrf.mxu0
        %v692 = vadd.f32 0.0, %v691
        %v693 = vpop.f32.mrf.mxu0
        %694 = vmatprep.mubr.f32.mxu0 0.0
        %695 = vmatmul.mubr.f32.gmra.mxu0 %v561
        %v696 = vpop.f32.mrf.mxu0
        %v697 = vadd.f32 0.0, %v696
        %v698 = vpop.f32.mrf.mxu0
        %699 = vmatprep.mubr.f32.mxu0 0.0
        %700 = vmatmul.mubr.f32.gmra.mxu0 %v562
        %v701 = vpop.f32.mrf.mxu0
        %v702 = vadd.f32 0.0, %v701
        %v703 = vpop.f32.mrf.mxu0
        %704 = vmatprep.mubr.f32.mxu0 0.0
        %705 = vmatmul.mubr.f32.gmra.mxu0 %v563
        %v706 = vpop.f32.mrf.mxu0
        %v707 = vadd.f32 0.0, %v706
        %v708 = vpop.f32.mrf.mxu0
        %709 = vmatprep.mubr.f32.mxu0 0.0
        %710 = vmatmul.mubr.f32.gmra.mxu0 %v564
        %v711 = vpop.f32.mrf.mxu0
        %v712 = vadd.f32 0.0, %v711
        %v713 = vpop.f32.mrf.mxu0
        %714 = vmatprep.mubr.f32.mxu0 0.0
        %715 = vmatmul.mubr.f32.gmra.mxu0 %v565
        %v716 = vpop.f32.mrf.mxu0
        %v717 = vadd.f32 0.0, %v716
        %v718 = vpop.f32.mrf.mxu0
        %719 = vmatprep.mubr.f32.mxu0 0.0
        %720 = vmatmul.mubr.f32.gmra.mxu0 %v566
        %v721 = vpop.f32.mrf.mxu0
        %v722 = vadd.f32 0.0, %v721
        %v723 = vpop.f32.mrf.mxu0
        %724 = vmatprep.mubr.f32.mxu0 0.0
        %725 = vmatmul.mubr.f32.gmra.mxu0 %v567
        %v726 = vpop.f32.mrf.mxu0
        %v727 = vadd.f32 0.0, %v726
        %v728 = vpop.f32.mrf.mxu0
        %729 = vdwg.mxu0
        %v730 = vadd.f32 %v474, %v652
        %v731 = vadd.f32 %v479, %v657
        %v732 = vadd.f32 %v484, %v662
        %v733 = vadd.f32 %v489, %v667
        %v734 = vadd.f32 %v494, %v672
        %v735 = vadd.f32 %v499, %v677
        %v736 = vadd.f32 %v504, %v682
        %v737 = vadd.f32 %v509, %v687
        %v738 = vadd.f32 %v514, %v692
        %v739 = vadd.f32 %v519, %v697
        %v740 = vadd.f32 %v524, %v702
        %v741 = vadd.f32 %v529, %v707
        %v742 = vadd.f32 %v534, %v712
        %v743 = vadd.f32 %v539, %v717
        %v744 = vadd.f32 %v544, %v722
        %v745 = vadd.f32 %v549, %v727
        %s746 = scalar_lea.vmem %s196, 24
        %v747 = vld [vmem:[%s746] sm:$0xff]
        %v748 = vld [vmem:[%s746 + $0x8] sm:$0xff]
        %v749 = vld [vmem:[%s746 + $0x18] sm:$0xff]
        %v750 = vld [vmem:[%s746 + $0x20] sm:$0xff]
        %v751 = vld [vmem:[%s746 + $0x30] sm:$0xff]
        %v752 = vld [vmem:[%s746 + $0x38] sm:$0xff]
        %v753 = vld [vmem:[%s746 + $0x48] sm:$0xff]
        %v754 = vld [vmem:[%s746 + $0x50] sm:$0xff]
        %v755 = vld [vmem:[%s746 + $0x60] sm:$0xff]
        %v756 = vld [vmem:[%s746 + $0x68] sm:$0xff]
        %v757 = vld [vmem:[%s746 + $0x78] sm:$0xff]
        %v758 = vld [vmem:[%s746 + $0x80] sm:$0xff]
        %v759 = vld [vmem:[%s746 + $0x90] sm:$0xff]
        %v760 = vld [vmem:[%s746 + $0x98] sm:$0xff]
        %v761 = vld [vmem:[%s746 + $0xa8] sm:$0xff]
        %v762 = vld [vmem:[%s746 + $0xb0] sm:$0xff]
        %s763 = scalar_lea.vmem %s1, 384
        %v764 = vld [vmem:[%s763] sm:$0xff]
        %v765 = vld [vmem:[%s763 + $0x8] sm:$0xff]
        %v766 = vld [vmem:[%s763 + $0x10] sm:$0xff]
        %v767 = vld [vmem:[%s763 + $0x18] sm:$0xff]
        %v768 = vld [vmem:[%s763 + $0x20] sm:$0xff]
        %v769 = vld [vmem:[%s763 + $0x28] sm:$0xff]
        %v770 = vld [vmem:[%s763 + $0x30] sm:$0xff]
        %v771 = vld [vmem:[%s763 + $0x38] sm:$0xff]
        %v772 = vld [vmem:[%s763 + $0x40] sm:$0xff]
        %v773 = vld [vmem:[%s763 + $0x48] sm:$0xff]
        %v774 = vld [vmem:[%s763 + $0x50] sm:$0xff]
        %v775 = vld [vmem:[%s763 + $0x58] sm:$0xff]
        %v776 = vld [vmem:[%s763 + $0x60] sm:$0xff]
        %v777 = vld [vmem:[%s763 + $0x68] sm:$0xff]
        %v778 = vld [vmem:[%s763 + $0x70] sm:$0xff]
        %v779 = vld [vmem:[%s763 + $0x78] sm:$0xff]
        %780 = vmatprep.subr.mxu0 0.0
        %781 = vmatpush1.msra.mxu0 %v779
        %782 = vmatprep.subr.mxu0 0.0
        %783 = vmatpush1.msra.mxu0 %v778
        %784 = vmatprep.subr.mxu0 0.0
        %785 = vmatpush1.msra.mxu0 %v777
        %786 = vmatprep.subr.mxu0 0.0
        %787 = vmatpush1.msra.mxu0 %v776
        %788 = vmatprep.subr.mxu0 0.0
        %789 = vmatpush1.msra.mxu0 %v775
        %790 = vmatprep.subr.mxu0 0.0
        %791 = vmatpush1.msra.mxu0 %v774
        %792 = vmatprep.subr.mxu0 0.0
        %793 = vmatpush1.msra.mxu0 %v773
        %794 = vmatprep.subr.mxu0 0.0
        %795 = vmatpush1.msra.mxu0 %v772
        %796 = vmatprep.subr.mxu0 0.0
        %797 = vmatpush1.msra.mxu0 %v771
        %798 = vmatprep.subr.mxu0 0.0
        %799 = vmatpush1.msra.mxu0 %v770
        %800 = vmatprep.subr.mxu0 0.0
        %801 = vmatpush1.msra.mxu0 %v769
        %802 = vmatprep.subr.mxu0 0.0
        %803 = vmatpush1.msra.mxu0 %v768
        %804 = vmatprep.subr.mxu0 0.0
        %805 = vmatpush1.msra.mxu0 %v767
        %806 = vmatprep.subr.mxu0 0.0
        %807 = vmatpush1.msra.mxu0 %v766
        %808 = vmatprep.subr.mxu0 0.0
        %809 = vmatpush1.msra.mxu0 %v765
        %810 = vmatprep.subr.mxu0 0.0
        %811 = vmatpush1.msra.mxu0 %v764
        %812 = vmatprep.subr.mxu0 0.0
        %813 = vmatpush2.msra.mxu0 0.0
        %814 = vmatprep.subr.mxu0 0.0
        %815 = vmatpush2.msra.mxu0 0.0
        %816 = vmatprep.subr.mxu0 0.0
        %817 = vmatpush2.msra.mxu0 0.0
        %818 = vmatprep.subr.mxu0 0.0
        %819 = vmatpush2.msra.mxu0 0.0
        %820 = vmatprep.subr.mxu0 0.0
        %821 = vmatpush2.msra.mxu0 0.0
        %822 = vmatprep.subr.mxu0 0.0
        %823 = vmatpush2.msra.mxu0 0.0
        %824 = vmatprep.subr.mxu0 0.0
        %825 = vmatpush2.msra.mxu0 0.0
        %826 = vmatprep.subr.mxu0 0.0
        %827 = vmatpush2.msra.mxu0 0.0
        %828 = vmatprep.subr.mxu0 0.0
        %829 = vmatpush2.msra.mxu0 0.0
        %830 = vmatprep.subr.mxu0 0.0
        %831 = vmatpush2.msra.mxu0 0.0
        %832 = vmatprep.subr.mxu0 0.0
        %833 = vmatpush2.msra.mxu0 0.0
        %834 = vmatprep.subr.mxu0 0.0
        %835 = vmatpush2.msra.mxu0 0.0
        %836 = vmatprep.subr.mxu0 0.0
        %837 = vmatpush2.msra.mxu0 0.0
        %838 = vmatprep.subr.mxu0 0.0
        %839 = vmatpush2.msra.mxu0 0.0
        %840 = vmatprep.subr.mxu0 0.0
        %841 = vmatpush2.msra.mxu0 0.0
        %842 = vmatprep.subr.mxu0 0.0
        %843 = vmatpush2.msra.mxu0 0.0
        %844 = vmatprep.mubr.f32.mxu0 0.0
        %845 = vmatmul.mubr.f32.gmra.mxu0 %v747
        %v846 = vpop.f32.mrf.mxu0
        %v847 = vadd.f32 0.0, %v846
        %v848 = vpop.f32.mrf.mxu0
        %849 = vmatprep.mubr.f32.mxu0 0.0
        %850 = vmatmul.mubr.f32.gmra.mxu0 %v748
        %v851 = vpop.f32.mrf.mxu0
        %v852 = vadd.f32 0.0, %v851
        %v853 = vpop.f32.mrf.mxu0
        %854 = vmatprep.mubr.f32.mxu0 0.0
        %855 = vmatmul.mubr.f32.gmra.mxu0 %v749
        %v856 = vpop.f32.mrf.mxu0
        %v857 = vadd.f32 0.0, %v856
        %v858 = vpop.f32.mrf.mxu0
        %859 = vmatprep.mubr.f32.mxu0 0.0
        %860 = vmatmul.mubr.f32.gmra.mxu0 %v750
        %v861 = vpop.f32.mrf.mxu0
        %v862 = vadd.f32 0.0, %v861
        %v863 = vpop.f32.mrf.mxu0
        %864 = vmatprep.mubr.f32.mxu0 0.0
        %865 = vmatmul.mubr.f32.gmra.mxu0 %v751
        %v866 = vpop.f32.mrf.mxu0
        %v867 = vadd.f32 0.0, %v866
        %v868 = vpop.f32.mrf.mxu0
        %869 = vmatprep.mubr.f32.mxu0 0.0
        %870 = vmatmul.mubr.f32.gmra.mxu0 %v752
        %v871 = vpop.f32.mrf.mxu0
        %v872 = vadd.f32 0.0, %v871
        %v873 = vpop.f32.mrf.mxu0
        %874 = vmatprep.mubr.f32.mxu0 0.0
        %875 = vmatmul.mubr.f32.gmra.mxu0 %v753
        %v876 = vpop.f32.mrf.mxu0
        %v877 = vadd.f32 0.0, %v876
        %v878 = vpop.f32.mrf.mxu0
        %879 = vmatprep.mubr.f32.mxu0 0.0
        %880 = vmatmul.mubr.f32.gmra.mxu0 %v754
        %v881 = vpop.f32.mrf.mxu0
        %v882 = vadd.f32 0.0, %v881
        %v883 = vpop.f32.mrf.mxu0
        %884 = vmatprep.mubr.f32.mxu0 0.0
        %885 = vmatmul.mubr.f32.gmra.mxu0 %v755
        %v886 = vpop.f32.mrf.mxu0
        %v887 = vadd.f32 0.0, %v886
        %v888 = vpop.f32.mrf.mxu0
        %889 = vmatprep.mubr.f32.mxu0 0.0
        %890 = vmatmul.mubr.f32.gmra.mxu0 %v756
        %v891 = vpop.f32.mrf.mxu0
        %v892 = vadd.f32 0.0, %v891
        %v893 = vpop.f32.mrf.mxu0
        %894 = vmatprep.mubr.f32.mxu0 0.0
        %895 = vmatmul.mubr.f32.gmra.mxu0 %v757
        %v896 = vpop.f32.mrf.mxu0
        %v897 = vadd.f32 0.0, %v896
        %v898 = vpop.f32.mrf.mxu0
        %899 = vmatprep.mubr.f32.mxu0 0.0
        %900 = vmatmul.mubr.f32.gmra.mxu0 %v758
        %v901 = vpop.f32.mrf.mxu0
        %v902 = vadd.f32 0.0, %v901
        %v903 = vpop.f32.mrf.mxu0
        %904 = vmatprep.mubr.f32.mxu0 0.0
        %905 = vmatmul.mubr.f32.gmra.mxu0 %v759
        %v906 = vpop.f32.mrf.mxu0
        %v907 = vadd.f32 0.0, %v906
        %v908 = vpop.f32.mrf.mxu0
        %909 = vmatprep.mubr.f32.mxu0 0.0
        %910 = vmatmul.mubr.f32.gmra.mxu0 %v760
        %v911 = vpop.f32.mrf.mxu0
        %v912 = vadd.f32 0.0, %v911
        %v913 = vpop.f32.mrf.mxu0
        %914 = vmatprep.mubr.f32.mxu0 0.0
        %915 = vmatmul.mubr.f32.gmra.mxu0 %v761
        %v916 = vpop.f32.mrf.mxu0
        %v917 = vadd.f32 0.0, %v916
        %v918 = vpop.f32.mrf.mxu0
        %919 = vmatprep.mubr.f32.mxu0 0.0
        %920 = vmatmul.mubr.f32.gmra.mxu0 %v762
        %v921 = vpop.f32.mrf.mxu0
        %v922 = vadd.f32 0.0, %v921
        %v923 = vpop.f32.mrf.mxu0
        %924 = vdwg.mxu0
        %v925 = vadd.f32 %v730, %v847
        %v926 = vadd.f32 %v731, %v852
        %v927 = vadd.f32 %v732, %v857
        %v928 = vadd.f32 %v733, %v862
        %v929 = vadd.f32 %v734, %v867
        %v930 = vadd.f32 %v735, %v872
        %v931 = vadd.f32 %v736, %v877
        %v932 = vadd.f32 %v737, %v882
        %v933 = vadd.f32 %v738, %v887
        %v934 = vadd.f32 %v739, %v892
        %v935 = vadd.f32 %v740, %v897
        %v936 = vadd.f32 %v741, %v902
        %v937 = vadd.f32 %v742, %v907
        %v938 = vadd.f32 %v743, %v912
        %v939 = vadd.f32 %v744, %v917
        %v940 = vadd.f32 %v745, %v922
        %v941 = vld [vmem:[%s746 + $0x1] sm:$0xff]
        %v942 = vld [vmem:[%s746 + $0x9] sm:$0xff]
        %v943 = vld [vmem:[%s746 + $0x19] sm:$0xff]
        %v944 = vld [vmem:[%s746 + $0x21] sm:$0xff]
        %v945 = vld [vmem:[%s746 + $0x31] sm:$0xff]
        %v946 = vld [vmem:[%s746 + $0x39] sm:$0xff]
        %v947 = vld [vmem:[%s746 + $0x49] sm:$0xff]
        %v948 = vld [vmem:[%s746 + $0x51] sm:$0xff]
        %v949 = vld [vmem:[%s746 + $0x61] sm:$0xff]
        %v950 = vld [vmem:[%s746 + $0x69] sm:$0xff]
        %v951 = vld [vmem:[%s746 + $0x79] sm:$0xff]
        %v952 = vld [vmem:[%s746 + $0x81] sm:$0xff]
        %v953 = vld [vmem:[%s746 + $0x91] sm:$0xff]
        %v954 = vld [vmem:[%s746 + $0x99] sm:$0xff]
        %v955 = vld [vmem:[%s746 + $0xa9] sm:$0xff]
        %v956 = vld [vmem:[%s746 + $0xb1] sm:$0xff]
        %s957 = scalar_lea.vmem %s1, 512
        %v958 = vld [vmem:[%s957] sm:$0xff]
        %v959 = vld [vmem:[%s957 + $0x8] sm:$0xff]
        %v960 = vld [vmem:[%s957 + $0x10] sm:$0xff]
        %v961 = vld [vmem:[%s957 + $0x18] sm:$0xff]
        %v962 = vld [vmem:[%s957 + $0x20] sm:$0xff]
        %v963 = vld [vmem:[%s957 + $0x28] sm:$0xff]
        %v964 = vld [vmem:[%s957 + $0x30] sm:$0xff]
        %v965 = vld [vmem:[%s957 + $0x38] sm:$0xff]
        %v966 = vld [vmem:[%s957 + $0x40] sm:$0xff]
        %v967 = vld [vmem:[%s957 + $0x48] sm:$0xff]
        %v968 = vld [vmem:[%s957 + $0x50] sm:$0xff]
        %v969 = vld [vmem:[%s957 + $0x58] sm:$0xff]
        %v970 = vld [vmem:[%s957 + $0x60] sm:$0xff]
        %v971 = vld [vmem:[%s957 + $0x68] sm:$0xff]
        %v972 = vld [vmem:[%s957 + $0x70] sm:$0xff]
        %v973 = vld [vmem:[%s957 + $0x78] sm:$0xff]
        %974 = vmatprep.subr.mxu0 0.0
        %975 = vmatpush1.msra.mxu0 %v973
        %976 = vmatprep.subr.mxu0 0.0
        %977 = vmatpush1.msra.mxu0 %v972
        %978 = vmatprep.subr.mxu0 0.0
        %979 = vmatpush1.msra.mxu0 %v971
        %980 = vmatprep.subr.mxu0 0.0
        %981 = vmatpush1.msra.mxu0 %v970
        %982 = vmatprep.subr.mxu0 0.0
        %983 = vmatpush1.msra.mxu0 %v969
        %984 = vmatprep.subr.mxu0 0.0
        %985 = vmatpush1.msra.mxu0 %v968
        %986 = vmatprep.subr.mxu0 0.0
        %987 = vmatpush1.msra.mxu0 %v967
        %988 = vmatprep.subr.mxu0 0.0
        %989 = vmatpush1.msra.mxu0 %v966
        %990 = vmatprep.subr.mxu0 0.0
        %991 = vmatpush1.msra.mxu0 %v965
        %992 = vmatprep.subr.mxu0 0.0
        %993 = vmatpush1.msra.mxu0 %v964
        %994 = vmatprep.subr.mxu0 0.0
        %995 = vmatpush1.msra.mxu0 %v963
        %996 = vmatprep.subr.mxu0 0.0
        %997 = vmatpush1.msra.mxu0 %v962
        %998 = vmatprep.subr.mxu0 0.0
        %999 = vmatpush1.msra.mxu0 %v961
        %1000 = vmatprep.subr.mxu0 0.0
        %1001 = vmatpush1.msra.mxu0 %v960
        %1002 = vmatprep.subr.mxu0 0.0
        %1003 = vmatpush1.msra.mxu0 %v959
        %1004 = vmatprep.subr.mxu0 0.0
        %1005 = vmatpush1.msra.mxu0 %v958
        %1006 = vmatprep.subr.mxu0 0.0
        %1007 = vmatpush2.msra.mxu0 0.0
        %1008 = vmatprep.subr.mxu0 0.0
        %1009 = vmatpush2.msra.mxu0 0.0
        %1010 = vmatprep.subr.mxu0 0.0
        %1011 = vmatpush2.msra.mxu0 0.0
        %1012 = vmatprep.subr.mxu0 0.0
        %1013 = vmatpush2.msra.mxu0 0.0
        %1014 = vmatprep.subr.mxu0 0.0
        %1015 = vmatpush2.msra.mxu0 0.0
        %1016 = vmatprep.subr.mxu0 0.0
        %1017 = vmatpush2.msra.mxu0 0.0
        %1018 = vmatprep.subr.mxu0 0.0
        %1019 = vmatpush2.msra.mxu0 0.0
        %1020 = vmatprep.subr.mxu0 0.0
        %1021 = vmatpush2.msra.mxu0 0.0
        %1022 = vmatprep.subr.mxu0 0.0
        %1023 = vmatpush2.msra.mxu0 0.0
        %1024 = vmatprep.subr.mxu0 0.0
        %1025 = vmatpush2.msra.mxu0 0.0
        %1026 = vmatprep.subr.mxu0 0.0
        %1027 = vmatpush2.msra.mxu0 0.0
        %1028 = vmatprep.subr.mxu0 0.0
        %1029 = vmatpush2.msra.mxu0 0.0
        %1030 = vmatprep.subr.mxu0 0.0
        %1031 = vmatpush2.msra.mxu0 0.0
        %1032 = vmatprep.subr.mxu0 0.0
        %1033 = vmatpush2.msra.mxu0 0.0
        %1034 = vmatprep.subr.mxu0 0.0
        %1035 = vmatpush2.msra.mxu0 0.0
        %1036 = vmatprep.subr.mxu0 0.0
        %1037 = vmatpush2.msra.mxu0 0.0
        %1038 = vmatprep.mubr.f32.mxu0 0.0
        %1039 = vmatmul.mubr.f32.gmra.mxu0 %v941
        %v1040 = vpop.f32.mrf.mxu0
        %v1041 = vadd.f32 0.0, %v1040
        %v1042 = vpop.f32.mrf.mxu0
        %1043 = vmatprep.mubr.f32.mxu0 0.0
        %1044 = vmatmul.mubr.f32.gmra.mxu0 %v942
        %v1045 = vpop.f32.mrf.mxu0
        %v1046 = vadd.f32 0.0, %v1045
        %v1047 = vpop.f32.mrf.mxu0
        %1048 = vmatprep.mubr.f32.mxu0 0.0
        %1049 = vmatmul.mubr.f32.gmra.mxu0 %v943
        %v1050 = vpop.f32.mrf.mxu0
        %v1051 = vadd.f32 0.0, %v1050
        %v1052 = vpop.f32.mrf.mxu0
        %1053 = vmatprep.mubr.f32.mxu0 0.0
        %1054 = vmatmul.mubr.f32.gmra.mxu0 %v944
        %v1055 = vpop.f32.mrf.mxu0
        %v1056 = vadd.f32 0.0, %v1055
        %v1057 = vpop.f32.mrf.mxu0
        %1058 = vmatprep.mubr.f32.mxu0 0.0
        %1059 = vmatmul.mubr.f32.gmra.mxu0 %v945
        %v1060 = vpop.f32.mrf.mxu0
        %v1061 = vadd.f32 0.0, %v1060
        %v1062 = vpop.f32.mrf.mxu0
        %1063 = vmatprep.mubr.f32.mxu0 0.0
        %1064 = vmatmul.mubr.f32.gmra.mxu0 %v946
        %v1065 = vpop.f32.mrf.mxu0
        %v1066 = vadd.f32 0.0, %v1065
        %v1067 = vpop.f32.mrf.mxu0
        %1068 = vmatprep.mubr.f32.mxu0 0.0
        %1069 = vmatmul.mubr.f32.gmra.mxu0 %v947
        %v1070 = vpop.f32.mrf.mxu0
        %v1071 = vadd.f32 0.0, %v1070
        %v1072 = vpop.f32.mrf.mxu0
        %1073 = vmatprep.mubr.f32.mxu0 0.0
        %1074 = vmatmul.mubr.f32.gmra.mxu0 %v948
        %v1075 = vpop.f32.mrf.mxu0
        %v1076 = vadd.f32 0.0, %v1075
        %v1077 = vpop.f32.mrf.mxu0
        %1078 = vmatprep.mubr.f32.mxu0 0.0
        %1079 = vmatmul.mubr.f32.gmra.mxu0 %v949
        %v1080 = vpop.f32.mrf.mxu0
        %v1081 = vadd.f32 0.0, %v1080
        %v1082 = vpop.f32.mrf.mxu0
        %1083 = vmatprep.mubr.f32.mxu0 0.0
        %1084 = vmatmul.mubr.f32.gmra.mxu0 %v950
        %v1085 = vpop.f32.mrf.mxu0
        %v1086 = vadd.f32 0.0, %v1085
        %v1087 = vpop.f32.mrf.mxu0
        %1088 = vmatprep.mubr.f32.mxu0 0.0
        %1089 = vmatmul.mubr.f32.gmra.mxu0 %v951
        %v1090 = vpop.f32.mrf.mxu0
        %v1091 = vadd.f32 0.0, %v1090
        %v1092 = vpop.f32.mrf.mxu0
        %1093 = vmatprep.mubr.f32.mxu0 0.0
        %1094 = vmatmul.mubr.f32.gmra.mxu0 %v952
        %v1095 = vpop.f32.mrf.mxu0
        %v1096 = vadd.f32 0.0, %v1095
        %v1097 = vpop.f32.mrf.mxu0
        %1098 = vmatprep.mubr.f32.mxu0 0.0
        %1099 = vmatmul.mubr.f32.gmra.mxu0 %v953
        %v1100 = vpop.f32.mrf.mxu0
        %v1101 = vadd.f32 0.0, %v1100
        %v1102 = vpop.f32.mrf.mxu0
        %1103 = vmatprep.mubr.f32.mxu0 0.0
        %1104 = vmatmul.mubr.f32.gmra.mxu0 %v954
        %v1105 = vpop.f32.mrf.mxu0
        %v1106 = vadd.f32 0.0, %v1105
        %v1107 = vpop.f32.mrf.mxu0
        %1108 = vmatprep.mubr.f32.mxu0 0.0
        %1109 = vmatmul.mubr.f32.gmra.mxu0 %v955
        %v1110 = vpop.f32.mrf.mxu0
        %v1111 = vadd.f32 0.0, %v1110
        %v1112 = vpop.f32.mrf.mxu0
        %1113 = vmatprep.mubr.f32.mxu0 0.0
        %1114 = vmatmul.mubr.f32.gmra.mxu0 %v956
        %v1115 = vpop.f32.mrf.mxu0
        %v1116 = vadd.f32 0.0, %v1115
        %v1117 = vpop.f32.mrf.mxu0
        %1118 = vdwg.mxu0
        %v1119 = vadd.f32 %v925, %v1041
        %v1120 = vadd.f32 %v926, %v1046
        %v1121 = vadd.f32 %v927, %v1051
        %v1122 = vadd.f32 %v928, %v1056
        %v1123 = vadd.f32 %v929, %v1061
        %v1124 = vadd.f32 %v930, %v1066
        %v1125 = vadd.f32 %v931, %v1071
        %v1126 = vadd.f32 %v932, %v1076
        %v1127 = vadd.f32 %v933, %v1081
        %v1128 = vadd.f32 %v934, %v1086
        %v1129 = vadd.f32 %v935, %v1091
        %v1130 = vadd.f32 %v936, %v1096
        %v1131 = vadd.f32 %v937, %v1101
        %v1132 = vadd.f32 %v938, %v1106
        %v1133 = vadd.f32 %v939, %v1111
        %v1134 = vadd.f32 %v940, %v1116
        %v1135 = vld [vmem:[%s746 + $0x2] sm:$0xff]
        %v1136 = vld [vmem:[%s746 + $0xa] sm:$0xff]
        %v1137 = vld [vmem:[%s746 + $0x1a] sm:$0xff]
        %v1138 = vld [vmem:[%s746 + $0x22] sm:$0xff]
        %v1139 = vld [vmem:[%s746 + $0x32] sm:$0xff]
        %v1140 = vld [vmem:[%s746 + $0x3a] sm:$0xff]
        %v1141 = vld [vmem:[%s746 + $0x4a] sm:$0xff]
        %v1142 = vld [vmem:[%s746 + $0x52] sm:$0xff]
        %v1143 = vld [vmem:[%s746 + $0x62] sm:$0xff]
        %v1144 = vld [vmem:[%s746 + $0x6a] sm:$0xff]
        %v1145 = vld [vmem:[%s746 + $0x7a] sm:$0xff]
        %v1146 = vld [vmem:[%s746 + $0x82] sm:$0xff]
        %v1147 = vld [vmem:[%s746 + $0x92] sm:$0xff]
        %v1148 = vld [vmem:[%s746 + $0x9a] sm:$0xff]
        %v1149 = vld [vmem:[%s746 + $0xaa] sm:$0xff]
        %v1150 = vld [vmem:[%s746 + $0xb2] sm:$0xff]
        %s1151 = scalar_lea.vmem %s1, 640
        %v1152 = vld [vmem:[%s1151] sm:$0xff]
        %v1153 = vld [vmem:[%s1151 + $0x8] sm:$0xff]
        %v1154 = vld [vmem:[%s1151 + $0x10] sm:$0xff]
        %v1155 = vld [vmem:[%s1151 + $0x18] sm:$0xff]
        %v1156 = vld [vmem:[%s1151 + $0x20] sm:$0xff]
        %v1157 = vld [vmem:[%s1151 + $0x28] sm:$0xff]
        %v1158 = vld [vmem:[%s1151 + $0x30] sm:$0xff]
        %v1159 = vld [vmem:[%s1151 + $0x38] sm:$0xff]
        %v1160 = vld [vmem:[%s1151 + $0x40] sm:$0xff]
        %v1161 = vld [vmem:[%s1151 + $0x48] sm:$0xff]
        %v1162 = vld [vmem:[%s1151 + $0x50] sm:$0xff]
        %v1163 = vld [vmem:[%s1151 + $0x58] sm:$0xff]
        %v1164 = vld [vmem:[%s1151 + $0x60] sm:$0xff]
        %v1165 = vld [vmem:[%s1151 + $0x68] sm:$0xff]
        %v1166 = vld [vmem:[%s1151 + $0x70] sm:$0xff]
        %v1167 = vld [vmem:[%s1151 + $0x78] sm:$0xff]
        %1168 = vmatprep.subr.mxu0 0.0
        %1169 = vmatpush1.msra.mxu0 %v1167
        %1170 = vmatprep.subr.mxu0 0.0
        %1171 = vmatpush1.msra.mxu0 %v1166
        %1172 = vmatprep.subr.mxu0 0.0
        %1173 = vmatpush1.msra.mxu0 %v1165
        %1174 = vmatprep.subr.mxu0 0.0
        %1175 = vmatpush1.msra.mxu0 %v1164
        %1176 = vmatprep.subr.mxu0 0.0
        %1177 = vmatpush1.msra.mxu0 %v1163
        %1178 = vmatprep.subr.mxu0 0.0
        %1179 = vmatpush1.msra.mxu0 %v1162
        %1180 = vmatprep.subr.mxu0 0.0
        %1181 = vmatpush1.msra.mxu0 %v1161
        %1182 = vmatprep.subr.mxu0 0.0
        %1183 = vmatpush1.msra.mxu0 %v1160
        %1184 = vmatprep.subr.mxu0 0.0
        %1185 = vmatpush1.msra.mxu0 %v1159
        %1186 = vmatprep.subr.mxu0 0.0
        %1187 = vmatpush1.msra.mxu0 %v1158
        %1188 = vmatprep.subr.mxu0 0.0
        %1189 = vmatpush1.msra.mxu0 %v1157
        %1190 = vmatprep.subr.mxu0 0.0
        %1191 = vmatpush1.msra.mxu0 %v1156
        %1192 = vmatprep.subr.mxu0 0.0
        %1193 = vmatpush1.msra.mxu0 %v1155
        %1194 = vmatprep.subr.mxu0 0.0
        %1195 = vmatpush1.msra.mxu0 %v1154
        %1196 = vmatprep.subr.mxu0 0.0
        %1197 = vmatpush1.msra.mxu0 %v1153
        %1198 = vmatprep.subr.mxu0 0.0
        %1199 = vmatpush1.msra.mxu0 %v1152
        %1200 = vmatprep.subr.mxu0 0.0
        %1201 = vmatpush2.msra.mxu0 0.0
        %1202 = vmatprep.subr.mxu0 0.0
        %1203 = vmatpush2.msra.mxu0 0.0
        %1204 = vmatprep.subr.mxu0 0.0
        %1205 = vmatpush2.msra.mxu0 0.0
        %1206 = vmatprep.subr.mxu0 0.0
        %1207 = vmatpush2.msra.mxu0 0.0
        %1208 = vmatprep.subr.mxu0 0.0
        %1209 = vmatpush2.msra.mxu0 0.0
        %1210 = vmatprep.subr.mxu0 0.0
        %1211 = vmatpush2.msra.mxu0 0.0
        %1212 = vmatprep.subr.mxu0 0.0
        %1213 = vmatpush2.msra.mxu0 0.0
        %1214 = vmatprep.subr.mxu0 0.0
        %1215 = vmatpush2.msra.mxu0 0.0
        %1216 = vmatprep.subr.mxu0 0.0
        %1217 = vmatpush2.msra.mxu0 0.0
        %1218 = vmatprep.subr.mxu0 0.0
        %1219 = vmatpush2.msra.mxu0 0.0
        %1220 = vmatprep.subr.mxu0 0.0
        %1221 = vmatpush2.msra.mxu0 0.0
        %1222 = vmatprep.subr.mxu0 0.0
        %1223 = vmatpush2.msra.mxu0 0.0
        %1224 = vmatprep.subr.mxu0 0.0
        %1225 = vmatpush2.msra.mxu0 0.0
        %1226 = vmatprep.subr.mxu0 0.0
        %1227 = vmatpush2.msra.mxu0 0.0
        %1228 = vmatprep.subr.mxu0 0.0
        %1229 = vmatpush2.msra.mxu0 0.0
        %1230 = vmatprep.subr.mxu0 0.0
        %1231 = vmatpush2.msra.mxu0 0.0
        %1232 = vmatprep.mubr.f32.mxu0 0.0
        %1233 = vmatmul.mubr.f32.gmra.mxu0 %v1135
        %v1234 = vpop.f32.mrf.mxu0
        %v1235 = vadd.f32 0.0, %v1234
        %v1236 = vpop.f32.mrf.mxu0
        %1237 = vmatprep.mubr.f32.mxu0 0.0
        %1238 = vmatmul.mubr.f32.gmra.mxu0 %v1136
        %v1239 = vpop.f32.mrf.mxu0
        %v1240 = vadd.f32 0.0, %v1239
        %v1241 = vpop.f32.mrf.mxu0
        %1242 = vmatprep.mubr.f32.mxu0 0.0
        %1243 = vmatmul.mubr.f32.gmra.mxu0 %v1137
        %v1244 = vpop.f32.mrf.mxu0
        %v1245 = vadd.f32 0.0, %v1244
        %v1246 = vpop.f32.mrf.mxu0
        %1247 = vmatprep.mubr.f32.mxu0 0.0
        %1248 = vmatmul.mubr.f32.gmra.mxu0 %v1138
        %v1249 = vpop.f32.mrf.mxu0
        %v1250 = vadd.f32 0.0, %v1249
        %v1251 = vpop.f32.mrf.mxu0
        %1252 = vmatprep.mubr.f32.mxu0 0.0
        %1253 = vmatmul.mubr.f32.gmra.mxu0 %v1139
        %v1254 = vpop.f32.mrf.mxu0
        %v1255 = vadd.f32 0.0, %v1254
        %v1256 = vpop.f32.mrf.mxu0
        %1257 = vmatprep.mubr.f32.mxu0 0.0
        %1258 = vmatmul.mubr.f32.gmra.mxu0 %v1140
        %v1259 = vpop.f32.mrf.mxu0
        %v1260 = vadd.f32 0.0, %v1259
        %v1261 = vpop.f32.mrf.mxu0
        %1262 = vmatprep.mubr.f32.mxu0 0.0
        %1263 = vmatmul.mubr.f32.gmra.mxu0 %v1141
        %v1264 = vpop.f32.mrf.mxu0
        %v1265 = vadd.f32 0.0, %v1264
        %v1266 = vpop.f32.mrf.mxu0
        %1267 = vmatprep.mubr.f32.mxu0 0.0
        %1268 = vmatmul.mubr.f32.gmra.mxu0 %v1142
        %v1269 = vpop.f32.mrf.mxu0
        %v1270 = vadd.f32 0.0, %v1269
        %v1271 = vpop.f32.mrf.mxu0
        %1272 = vmatprep.mubr.f32.mxu0 0.0
        %1273 = vmatmul.mubr.f32.gmra.mxu0 %v1143
        %v1274 = vpop.f32.mrf.mxu0
        %v1275 = vadd.f32 0.0, %v1274
        %v1276 = vpop.f32.mrf.mxu0
        %1277 = vmatprep.mubr.f32.mxu0 0.0
        %1278 = vmatmul.mubr.f32.gmra.mxu0 %v1144
        %v1279 = vpop.f32.mrf.mxu0
        %v1280 = vadd.f32 0.0, %v1279
        %v1281 = vpop.f32.mrf.mxu0
        %1282 = vmatprep.mubr.f32.mxu0 0.0
        %1283 = vmatmul.mubr.f32.gmra.mxu0 %v1145
        %v1284 = vpop.f32.mrf.mxu0
        %v1285 = vadd.f32 0.0, %v1284
        %v1286 = vpop.f32.mrf.mxu0
        %1287 = vmatprep.mubr.f32.mxu0 0.0
        %1288 = vmatmul.mubr.f32.gmra.mxu0 %v1146
        %v1289 = vpop.f32.mrf.mxu0
        %v1290 = vadd.f32 0.0, %v1289
        %v1291 = vpop.f32.mrf.mxu0
        %1292 = vmatprep.mubr.f32.mxu0 0.0
        %1293 = vmatmul.mubr.f32.gmra.mxu0 %v1147
        %v1294 = vpop.f32.mrf.mxu0
        %v1295 = vadd.f32 0.0, %v1294
        %v1296 = vpop.f32.mrf.mxu0
        %1297 = vmatprep.mubr.f32.mxu0 0.0
        %1298 = vmatmul.mubr.f32.gmra.mxu0 %v1148
        %v1299 = vpop.f32.mrf.mxu0
        %v1300 = vadd.f32 0.0, %v1299
        %v1301 = vpop.f32.mrf.mxu0
        %1302 = vmatprep.mubr.f32.mxu0 0.0
        %1303 = vmatmul.mubr.f32.gmra.mxu0 %v1149
        %v1304 = vpop.f32.mrf.mxu0
        %v1305 = vadd.f32 0.0, %v1304
        %v1306 = vpop.f32.mrf.mxu0
        %1307 = vmatprep.mubr.f32.mxu0 0.0
        %1308 = vmatmul.mubr.f32.gmra.mxu0 %v1150
        %v1309 = vpop.f32.mrf.mxu0
        %v1310 = vadd.f32 0.0, %v1309
        %v1311 = vpop.f32.mrf.mxu0
        %1312 = vdwg.mxu0
        %v1313 = vadd.f32 %v1119, %v1235
        %v1314 = vadd.f32 %v1120, %v1240
        %v1315 = vadd.f32 %v1121, %v1245
        %v1316 = vadd.f32 %v1122, %v1250
        %v1317 = vadd.f32 %v1123, %v1255
        %v1318 = vadd.f32 %v1124, %v1260
        %v1319 = vadd.f32 %v1125, %v1265
        %v1320 = vadd.f32 %v1126, %v1270
        %v1321 = vadd.f32 %v1127, %v1275
        %v1322 = vadd.f32 %v1128, %v1280
        %v1323 = vadd.f32 %v1129, %v1285
        %v1324 = vadd.f32 %v1130, %v1290
        %v1325 = vadd.f32 %v1131, %v1295
        %v1326 = vadd.f32 %v1132, %v1300
        %v1327 = vadd.f32 %v1133, %v1305
        %v1328 = vadd.f32 %v1134, %v1310
        %s1329 = scalar_lea.vmem %s196, 48
        %v1330 = vld [vmem:[%s1329] sm:$0xff]
        %v1331 = vld [vmem:[%s1329 + $0x8] sm:$0xff]
        %v1332 = vld [vmem:[%s1329 + $0x18] sm:$0xff]
        %v1333 = vld [vmem:[%s1329 + $0x20] sm:$0xff]
        %v1334 = vld [vmem:[%s1329 + $0x30] sm:$0xff]
        %v1335 = vld [vmem:[%s1329 + $0x38] sm:$0xff]
        %v1336 = vld [vmem:[%s1329 + $0x48] sm:$0xff]
        %v1337 = vld [vmem:[%s1329 + $0x50] sm:$0xff]
        %v1338 = vld [vmem:[%s1329 + $0x60] sm:$0xff]
        %v1339 = vld [vmem:[%s1329 + $0x68] sm:$0xff]
        %v1340 = vld [vmem:[%s1329 + $0x78] sm:$0xff]
        %v1341 = vld [vmem:[%s1329 + $0x80] sm:$0xff]
        %v1342 = vld [vmem:[%s1329 + $0x90] sm:$0xff]
        %v1343 = vld [vmem:[%s1329 + $0x98] sm:$0xff]
        %v1344 = vld [vmem:[%s1329 + $0xa8] sm:$0xff]
        %v1345 = vld [vmem:[%s1329 + $0xb0] sm:$0xff]
        %s1346 = scalar_lea.vmem %s1, 768
        %v1347 = vld [vmem:[%s1346] sm:$0xff]
        %v1348 = vld [vmem:[%s1346 + $0x8] sm:$0xff]
        %v1349 = vld [vmem:[%s1346 + $0x10] sm:$0xff]
        %v1350 = vld [vmem:[%s1346 + $0x18] sm:$0xff]
        %v1351 = vld [vmem:[%s1346 + $0x20] sm:$0xff]
        %v1352 = vld [vmem:[%s1346 + $0x28] sm:$0xff]
        %v1353 = vld [vmem:[%s1346 + $0x30] sm:$0xff]
        %v1354 = vld [vmem:[%s1346 + $0x38] sm:$0xff]
        %v1355 = vld [vmem:[%s1346 + $0x40] sm:$0xff]
        %v1356 = vld [vmem:[%s1346 + $0x48] sm:$0xff]
        %v1357 = vld [vmem:[%s1346 + $0x50] sm:$0xff]
        %v1358 = vld [vmem:[%s1346 + $0x58] sm:$0xff]
        %v1359 = vld [vmem:[%s1346 + $0x60] sm:$0xff]
        %v1360 = vld [vmem:[%s1346 + $0x68] sm:$0xff]
        %v1361 = vld [vmem:[%s1346 + $0x70] sm:$0xff]
        %v1362 = vld [vmem:[%s1346 + $0x78] sm:$0xff]
        %1363 = vmatprep.subr.mxu0 0.0
        %1364 = vmatpush1.msra.mxu0 %v1362
        %1365 = vmatprep.subr.mxu0 0.0
        %1366 = vmatpush1.msra.mxu0 %v1361
        %1367 = vmatprep.subr.mxu0 0.0
        %1368 = vmatpush1.msra.mxu0 %v1360
        %1369 = vmatprep.subr.mxu0 0.0
        %1370 = vmatpush1.msra.mxu0 %v1359
        %1371 = vmatprep.subr.mxu0 0.0
        %1372 = vmatpush1.msra.mxu0 %v1358
        %1373 = vmatprep.subr.mxu0 0.0
        %1374 = vmatpush1.msra.mxu0 %v1357
        %1375 = vmatprep.subr.mxu0 0.0
        %1376 = vmatpush1.msra.mxu0 %v1356
        %1377 = vmatprep.subr.mxu0 0.0
        %1378 = vmatpush1.msra.mxu0 %v1355
        %1379 = vmatprep.subr.mxu0 0.0
        %1380 = vmatpush1.msra.mxu0 %v1354
        %1381 = vmatprep.subr.mxu0 0.0
        %1382 = vmatpush1.msra.mxu0 %v1353
        %1383 = vmatprep.subr.mxu0 0.0
        %1384 = vmatpush1.msra.mxu0 %v1352
        %1385 = vmatprep.subr.mxu0 0.0
        %1386 = vmatpush1.msra.mxu0 %v1351
        %1387 = vmatprep.subr.mxu0 0.0
        %1388 = vmatpush1.msra.mxu0 %v1350
        %1389 = vmatprep.subr.mxu0 0.0
        %1390 = vmatpush1.msra.mxu0 %v1349
        %1391 = vmatprep.subr.mxu0 0.0
        %1392 = vmatpush1.msra.mxu0 %v1348
        %1393 = vmatprep.subr.mxu0 0.0
        %1394 = vmatpush1.msra.mxu0 %v1347
        %1395 = vmatprep.subr.mxu0 0.0
        %1396 = vmatpush2.msra.mxu0 0.0
        %1397 = vmatprep.subr.mxu0 0.0
        %1398 = vmatpush2.msra.mxu0 0.0
        %1399 = vmatprep.subr.mxu0 0.0
        %1400 = vmatpush2.msra.mxu0 0.0
        %1401 = vmatprep.subr.mxu0 0.0
        %1402 = vmatpush2.msra.mxu0 0.0
        %1403 = vmatprep.subr.mxu0 0.0
        %1404 = vmatpush2.msra.mxu0 0.0
        %1405 = vmatprep.subr.mxu0 0.0
        %1406 = vmatpush2.msra.mxu0 0.0
        %1407 = vmatprep.subr.mxu0 0.0
        %1408 = vmatpush2.msra.mxu0 0.0
        %1409 = vmatprep.subr.mxu0 0.0
        %1410 = vmatpush2.msra.mxu0 0.0
        %1411 = vmatprep.subr.mxu0 0.0
        %1412 = vmatpush2.msra.mxu0 0.0
        %1413 = vmatprep.subr.mxu0 0.0
        %1414 = vmatpush2.msra.mxu0 0.0
        %1415 = vmatprep.subr.mxu0 0.0
        %1416 = vmatpush2.msra.mxu0 0.0
        %1417 = vmatprep.subr.mxu0 0.0
        %1418 = vmatpush2.msra.mxu0 0.0
        %1419 = vmatprep.subr.mxu0 0.0
        %1420 = vmatpush2.msra.mxu0 0.0
        %1421 = vmatprep.subr.mxu0 0.0
        %1422 = vmatpush2.msra.mxu0 0.0
        %1423 = vmatprep.subr.mxu0 0.0
        %1424 = vmatpush2.msra.mxu0 0.0
        %1425 = vmatprep.subr.mxu0 0.0
        %1426 = vmatpush2.msra.mxu0 0.0
        %1427 = vmatprep.mubr.f32.mxu0 0.0
        %1428 = vmatmul.mubr.f32.gmra.mxu0 %v1330
        %v1429 = vpop.f32.mrf.mxu0
        %v1430 = vadd.f32 0.0, %v1429
        %v1431 = vpop.f32.mrf.mxu0
        %1432 = vmatprep.mubr.f32.mxu0 0.0
        %1433 = vmatmul.mubr.f32.gmra.mxu0 %v1331
        %v1434 = vpop.f32.mrf.mxu0
        %v1435 = vadd.f32 0.0, %v1434
        %v1436 = vpop.f32.mrf.mxu0
        %1437 = vmatprep.mubr.f32.mxu0 0.0
        %1438 = vmatmul.mubr.f32.gmra.mxu0 %v1332
        %v1439 = vpop.f32.mrf.mxu0
        %v1440 = vadd.f32 0.0, %v1439
        %v1441 = vpop.f32.mrf.mxu0
        %1442 = vmatprep.mubr.f32.mxu0 0.0
        %1443 = vmatmul.mubr.f32.gmra.mxu0 %v1333
        %v1444 = vpop.f32.mrf.mxu0
        %v1445 = vadd.f32 0.0, %v1444
        %v1446 = vpop.f32.mrf.mxu0
        %1447 = vmatprep.mubr.f32.mxu0 0.0
        %1448 = vmatmul.mubr.f32.gmra.mxu0 %v1334
        %v1449 = vpop.f32.mrf.mxu0
        %v1450 = vadd.f32 0.0, %v1449
        %v1451 = vpop.f32.mrf.mxu0
        %1452 = vmatprep.mubr.f32.mxu0 0.0
        %1453 = vmatmul.mubr.f32.gmra.mxu0 %v1335
        %v1454 = vpop.f32.mrf.mxu0
        %v1455 = vadd.f32 0.0, %v1454
        %v1456 = vpop.f32.mrf.mxu0
        %1457 = vmatprep.mubr.f32.mxu0 0.0
        %1458 = vmatmul.mubr.f32.gmra.mxu0 %v1336
        %v1459 = vpop.f32.mrf.mxu0
        %v1460 = vadd.f32 0.0, %v1459
        %v1461 = vpop.f32.mrf.mxu0
        %1462 = vmatprep.mubr.f32.mxu0 0.0
        %1463 = vmatmul.mubr.f32.gmra.mxu0 %v1337
        %v1464 = vpop.f32.mrf.mxu0
        %v1465 = vadd.f32 0.0, %v1464
        %v1466 = vpop.f32.mrf.mxu0
        %1467 = vmatprep.mubr.f32.mxu0 0.0
        %1468 = vmatmul.mubr.f32.gmra.mxu0 %v1338
        %v1469 = vpop.f32.mrf.mxu0
        %v1470 = vadd.f32 0.0, %v1469
        %v1471 = vpop.f32.mrf.mxu0
        %1472 = vmatprep.mubr.f32.mxu0 0.0
        %1473 = vmatmul.mubr.f32.gmra.mxu0 %v1339
        %v1474 = vpop.f32.mrf.mxu0
        %v1475 = vadd.f32 0.0, %v1474
        %v1476 = vpop.f32.mrf.mxu0
        %1477 = vmatprep.mubr.f32.mxu0 0.0
        %1478 = vmatmul.mubr.f32.gmra.mxu0 %v1340
        %v1479 = vpop.f32.mrf.mxu0
        %v1480 = vadd.f32 0.0, %v1479
        %v1481 = vpop.f32.mrf.mxu0
        %1482 = vmatprep.mubr.f32.mxu0 0.0
        %1483 = vmatmul.mubr.f32.gmra.mxu0 %v1341
        %v1484 = vpop.f32.mrf.mxu0
        %v1485 = vadd.f32 0.0, %v1484
        %v1486 = vpop.f32.mrf.mxu0
        %1487 = vmatprep.mubr.f32.mxu0 0.0
        %1488 = vmatmul.mubr.f32.gmra.mxu0 %v1342
        %v1489 = vpop.f32.mrf.mxu0
        %v1490 = vadd.f32 0.0, %v1489
        %v1491 = vpop.f32.mrf.mxu0
        %1492 = vmatprep.mubr.f32.mxu0 0.0
        %1493 = vmatmul.mubr.f32.gmra.mxu0 %v1343
        %v1494 = vpop.f32.mrf.mxu0
        %v1495 = vadd.f32 0.0, %v1494
        %v1496 = vpop.f32.mrf.mxu0
        %1497 = vmatprep.mubr.f32.mxu0 0.0
        %1498 = vmatmul.mubr.f32.gmra.mxu0 %v1344
        %v1499 = vpop.f32.mrf.mxu0
        %v1500 = vadd.f32 0.0, %v1499
        %v1501 = vpop.f32.mrf.mxu0
        %1502 = vmatprep.mubr.f32.mxu0 0.0
        %1503 = vmatmul.mubr.f32.gmra.mxu0 %v1345
        %v1504 = vpop.f32.mrf.mxu0
        %v1505 = vadd.f32 0.0, %v1504
        %v1506 = vpop.f32.mrf.mxu0
        %1507 = vdwg.mxu0
        %v1508 = vadd.f32 %v1313, %v1430
        %v1509 = vadd.f32 %v1314, %v1435
        %v1510 = vadd.f32 %v1315, %v1440
        %v1511 = vadd.f32 %v1316, %v1445
        %v1512 = vadd.f32 %v1317, %v1450
        %v1513 = vadd.f32 %v1318, %v1455
        %v1514 = vadd.f32 %v1319, %v1460
        %v1515 = vadd.f32 %v1320, %v1465
        %v1516 = vadd.f32 %v1321, %v1470
        %v1517 = vadd.f32 %v1322, %v1475
        %v1518 = vadd.f32 %v1323, %v1480
        %v1519 = vadd.f32 %v1324, %v1485
        %v1520 = vadd.f32 %v1325, %v1490
        %v1521 = vadd.f32 %v1326, %v1495
        %v1522 = vadd.f32 %v1327, %v1500
        %v1523 = vadd.f32 %v1328, %v1505
        %v1524 = vld [vmem:[%s1329 + $0x1] sm:$0xff]
        %v1525 = vld [vmem:[%s1329 + $0x9] sm:$0xff]
        %v1526 = vld [vmem:[%s1329 + $0x19] sm:$0xff]
        %v1527 = vld [vmem:[%s1329 + $0x21] sm:$0xff]
        %v1528 = vld [vmem:[%s1329 + $0x31] sm:$0xff]
        %v1529 = vld [vmem:[%s1329 + $0x39] sm:$0xff]
        %v1530 = vld [vmem:[%s1329 + $0x49] sm:$0xff]
        %v1531 = vld [vmem:[%s1329 + $0x51] sm:$0xff]
        %v1532 = vld [vmem:[%s1329 + $0x61] sm:$0xff]
        %v1533 = vld [vmem:[%s1329 + $0x69] sm:$0xff]
        %v1534 = vld [vmem:[%s1329 + $0x79] sm:$0xff]
        %v1535 = vld [vmem:[%s1329 + $0x81] sm:$0xff]
        %v1536 = vld [vmem:[%s1329 + $0x91] sm:$0xff]
        %v1537 = vld [vmem:[%s1329 + $0x99] sm:$0xff]
        %v1538 = vld [vmem:[%s1329 + $0xa9] sm:$0xff]
        %v1539 = vld [vmem:[%s1329 + $0xb1] sm:$0xff]
        %s1540 = scalar_lea.vmem %s1, 896
        %v1541 = vld [vmem:[%s1540] sm:$0xff]
        %v1542 = vld [vmem:[%s1540 + $0x8] sm:$0xff]
        %v1543 = vld [vmem:[%s1540 + $0x10] sm:$0xff]
        %v1544 = vld [vmem:[%s1540 + $0x18] sm:$0xff]
        %v1545 = vld [vmem:[%s1540 + $0x20] sm:$0xff]
        %v1546 = vld [vmem:[%s1540 + $0x28] sm:$0xff]
        %v1547 = vld [vmem:[%s1540 + $0x30] sm:$0xff]
        %v1548 = vld [vmem:[%s1540 + $0x38] sm:$0xff]
        %v1549 = vld [vmem:[%s1540 + $0x40] sm:$0xff]
        %v1550 = vld [vmem:[%s1540 + $0x48] sm:$0xff]
        %v1551 = vld [vmem:[%s1540 + $0x50] sm:$0xff]
        %v1552 = vld [vmem:[%s1540 + $0x58] sm:$0xff]
        %v1553 = vld [vmem:[%s1540 + $0x60] sm:$0xff]
        %v1554 = vld [vmem:[%s1540 + $0x68] sm:$0xff]
        %v1555 = vld [vmem:[%s1540 + $0x70] sm:$0xff]
        %v1556 = vld [vmem:[%s1540 + $0x78] sm:$0xff]
        %1557 = vmatprep.subr.mxu0 0.0
        %1558 = vmatpush1.msra.mxu0 %v1556
        %1559 = vmatprep.subr.mxu0 0.0
        %1560 = vmatpush1.msra.mxu0 %v1555
        %1561 = vmatprep.subr.mxu0 0.0
        %1562 = vmatpush1.msra.mxu0 %v1554
        %1563 = vmatprep.subr.mxu0 0.0
        %1564 = vmatpush1.msra.mxu0 %v1553
        %1565 = vmatprep.subr.mxu0 0.0
        %1566 = vmatpush1.msra.mxu0 %v1552
        %1567 = vmatprep.subr.mxu0 0.0
        %1568 = vmatpush1.msra.mxu0 %v1551
        %1569 = vmatprep.subr.mxu0 0.0
        %1570 = vmatpush1.msra.mxu0 %v1550
        %1571 = vmatprep.subr.mxu0 0.0
        %1572 = vmatpush1.msra.mxu0 %v1549
        %1573 = vmatprep.subr.mxu0 0.0
        %1574 = vmatpush1.msra.mxu0 %v1548
        %1575 = vmatprep.subr.mxu0 0.0
        %1576 = vmatpush1.msra.mxu0 %v1547
        %1577 = vmatprep.subr.mxu0 0.0
        %1578 = vmatpush1.msra.mxu0 %v1546
        %1579 = vmatprep.subr.mxu0 0.0
        %1580 = vmatpush1.msra.mxu0 %v1545
        %1581 = vmatprep.subr.mxu0 0.0
        %1582 = vmatpush1.msra.mxu0 %v1544
        %1583 = vmatprep.subr.mxu0 0.0
        %1584 = vmatpush1.msra.mxu0 %v1543
        %1585 = vmatprep.subr.mxu0 0.0
        %1586 = vmatpush1.msra.mxu0 %v1542
        %1587 = vmatprep.subr.mxu0 0.0
        %1588 = vmatpush1.msra.mxu0 %v1541
        %1589 = vmatprep.subr.mxu0 0.0
        %1590 = vmatpush2.msra.mxu0 0.0
        %1591 = vmatprep.subr.mxu0 0.0
        %1592 = vmatpush2.msra.mxu0 0.0
        %1593 = vmatprep.subr.mxu0 0.0
        %1594 = vmatpush2.msra.mxu0 0.0
        %1595 = vmatprep.subr.mxu0 0.0
        %1596 = vmatpush2.msra.mxu0 0.0
        %1597 = vmatprep.subr.mxu0 0.0
        %1598 = vmatpush2.msra.mxu0 0.0
        %1599 = vmatprep.subr.mxu0 0.0
        %1600 = vmatpush2.msra.mxu0 0.0
        %1601 = vmatprep.subr.mxu0 0.0
        %1602 = vmatpush2.msra.mxu0 0.0
        %1603 = vmatprep.subr.mxu0 0.0
        %1604 = vmatpush2.msra.mxu0 0.0
        %1605 = vmatprep.subr.mxu0 0.0
        %1606 = vmatpush2.msra.mxu0 0.0
        %1607 = vmatprep.subr.mxu0 0.0
        %1608 = vmatpush2.msra.mxu0 0.0
        %1609 = vmatprep.subr.mxu0 0.0
        %1610 = vmatpush2.msra.mxu0 0.0
        %1611 = vmatprep.subr.mxu0 0.0
        %1612 = vmatpush2.msra.mxu0 0.0
        %1613 = vmatprep.subr.mxu0 0.0
        %1614 = vmatpush2.msra.mxu0 0.0
        %1615 = vmatprep.subr.mxu0 0.0
        %1616 = vmatpush2.msra.mxu0 0.0
        %1617 = vmatprep.subr.mxu0 0.0
        %1618 = vmatpush2.msra.mxu0 0.0
        %1619 = vmatprep.subr.mxu0 0.0
        %1620 = vmatpush2.msra.mxu0 0.0
        %1621 = vmatprep.mubr.f32.mxu0 0.0
        %1622 = vmatmul.mubr.f32.gmra.mxu0 %v1524
        %v1623 = vpop.f32.mrf.mxu0
        %v1624 = vadd.f32 0.0, %v1623
        %v1625 = vpop.f32.mrf.mxu0
        %1626 = vmatprep.mubr.f32.mxu0 0.0
        %1627 = vmatmul.mubr.f32.gmra.mxu0 %v1525
        %v1628 = vpop.f32.mrf.mxu0
        %v1629 = vadd.f32 0.0, %v1628
        %v1630 = vpop.f32.mrf.mxu0
        %1631 = vmatprep.mubr.f32.mxu0 0.0
        %1632 = vmatmul.mubr.f32.gmra.mxu0 %v1526
        %v1633 = vpop.f32.mrf.mxu0
        %v1634 = vadd.f32 0.0, %v1633
        %v1635 = vpop.f32.mrf.mxu0
        %1636 = vmatprep.mubr.f32.mxu0 0.0
        %1637 = vmatmul.mubr.f32.gmra.mxu0 %v1527
        %v1638 = vpop.f32.mrf.mxu0
        %v1639 = vadd.f32 0.0, %v1638
        %v1640 = vpop.f32.mrf.mxu0
        %1641 = vmatprep.mubr.f32.mxu0 0.0
        %1642 = vmatmul.mubr.f32.gmra.mxu0 %v1528
        %v1643 = vpop.f32.mrf.mxu0
        %v1644 = vadd.f32 0.0, %v1643
        %v1645 = vpop.f32.mrf.mxu0
        %1646 = vmatprep.mubr.f32.mxu0 0.0
        %1647 = vmatmul.mubr.f32.gmra.mxu0 %v1529
        %v1648 = vpop.f32.mrf.mxu0
        %v1649 = vadd.f32 0.0, %v1648
        %v1650 = vpop.f32.mrf.mxu0
        %1651 = vmatprep.mubr.f32.mxu0 0.0
        %1652 = vmatmul.mubr.f32.gmra.mxu0 %v1530
        %v1653 = vpop.f32.mrf.mxu0
        %v1654 = vadd.f32 0.0, %v1653
        %v1655 = vpop.f32.mrf.mxu0
        %1656 = vmatprep.mubr.f32.mxu0 0.0
        %1657 = vmatmul.mubr.f32.gmra.mxu0 %v1531
        %v1658 = vpop.f32.mrf.mxu0
        %v1659 = vadd.f32 0.0, %v1658
        %v1660 = vpop.f32.mrf.mxu0
        %1661 = vmatprep.mubr.f32.mxu0 0.0
        %1662 = vmatmul.mubr.f32.gmra.mxu0 %v1532
        %v1663 = vpop.f32.mrf.mxu0
        %v1664 = vadd.f32 0.0, %v1663
        %v1665 = vpop.f32.mrf.mxu0
        %1666 = vmatprep.mubr.f32.mxu0 0.0
        %1667 = vmatmul.mubr.f32.gmra.mxu0 %v1533
        %v1668 = vpop.f32.mrf.mxu0
        %v1669 = vadd.f32 0.0, %v1668
        %v1670 = vpop.f32.mrf.mxu0
        %1671 = vmatprep.mubr.f32.mxu0 0.0
        %1672 = vmatmul.mubr.f32.gmra.mxu0 %v1534
        %v1673 = vpop.f32.mrf.mxu0
        %v1674 = vadd.f32 0.0, %v1673
        %v1675 = vpop.f32.mrf.mxu0
        %1676 = vmatprep.mubr.f32.mxu0 0.0
        %1677 = vmatmul.mubr.f32.gmra.mxu0 %v1535
        %v1678 = vpop.f32.mrf.mxu0
        %v1679 = vadd.f32 0.0, %v1678
        %v1680 = vpop.f32.mrf.mxu0
        %1681 = vmatprep.mubr.f32.mxu0 0.0
        %1682 = vmatmul.mubr.f32.gmra.mxu0 %v1536
        %v1683 = vpop.f32.mrf.mxu0
        %v1684 = vadd.f32 0.0, %v1683
        %v1685 = vpop.f32.mrf.mxu0
        %1686 = vmatprep.mubr.f32.mxu0 0.0
        %1687 = vmatmul.mubr.f32.gmra.mxu0 %v1537
        %v1688 = vpop.f32.mrf.mxu0
        %v1689 = vadd.f32 0.0, %v1688
        %v1690 = vpop.f32.mrf.mxu0
        %1691 = vmatprep.mubr.f32.mxu0 0.0
        %1692 = vmatmul.mubr.f32.gmra.mxu0 %v1538
        %v1693 = vpop.f32.mrf.mxu0
        %v1694 = vadd.f32 0.0, %v1693
        %v1695 = vpop.f32.mrf.mxu0
        %1696 = vmatprep.mubr.f32.mxu0 0.0
        %1697 = vmatmul.mubr.f32.gmra.mxu0 %v1539
        %v1698 = vpop.f32.mrf.mxu0
        %v1699 = vadd.f32 0.0, %v1698
        %v1700 = vpop.f32.mrf.mxu0
        %1701 = vdwg.mxu0
        %v1702 = vadd.f32 %v1508, %v1624
        %v1703 = vadd.f32 %v1509, %v1629
        %v1704 = vadd.f32 %v1510, %v1634
        %v1705 = vadd.f32 %v1511, %v1639
        %v1706 = vadd.f32 %v1512, %v1644
        %v1707 = vadd.f32 %v1513, %v1649
        %v1708 = vadd.f32 %v1514, %v1654
        %v1709 = vadd.f32 %v1515, %v1659
        %v1710 = vadd.f32 %v1516, %v1664
        %v1711 = vadd.f32 %v1517, %v1669
        %v1712 = vadd.f32 %v1518, %v1674
        %v1713 = vadd.f32 %v1519, %v1679
        %v1714 = vadd.f32 %v1520, %v1684
        %v1715 = vadd.f32 %v1521, %v1689
        %v1716 = vadd.f32 %v1522, %v1694
        %v1717 = vadd.f32 %v1523, %v1699
        %v1718 = vld [vmem:[%s1329 + $0x2] sm:$0xff]
        %v1719 = vld [vmem:[%s1329 + $0xa] sm:$0xff]
        %v1720 = vld [vmem:[%s1329 + $0x1a] sm:$0xff]
        %v1721 = vld [vmem:[%s1329 + $0x22] sm:$0xff]
        %v1722 = vld [vmem:[%s1329 + $0x32] sm:$0xff]
        %v1723 = vld [vmem:[%s1329 + $0x3a] sm:$0xff]
        %v1724 = vld [vmem:[%s1329 + $0x4a] sm:$0xff]
        %v1725 = vld [vmem:[%s1329 + $0x52] sm:$0xff]
        %v1726 = vld [vmem:[%s1329 + $0x62] sm:$0xff]
        %v1727 = vld [vmem:[%s1329 + $0x6a] sm:$0xff]
        %v1728 = vld [vmem:[%s1329 + $0x7a] sm:$0xff]
        %v1729 = vld [vmem:[%s1329 + $0x82] sm:$0xff]
        %v1730 = vld [vmem:[%s1329 + $0x92] sm:$0xff]
        %v1731 = vld [vmem:[%s1329 + $0x9a] sm:$0xff]
        %v1732 = vld [vmem:[%s1329 + $0xaa] sm:$0xff]
        %v1733 = vld [vmem:[%s1329 + $0xb2] sm:$0xff]
        %s1734 = scalar_lea.vmem %s1, 1024
        %v1735 = vld [vmem:[%s1734] sm:$0xff]
        %v1736 = vld [vmem:[%s1734 + $0x8] sm:$0xff]
        %v1737 = vld [vmem:[%s1734 + $0x10] sm:$0xff]
        %v1738 = vld [vmem:[%s1734 + $0x18] sm:$0xff]
        %v1739 = vld [vmem:[%s1734 + $0x20] sm:$0xff]
        %v1740 = vld [vmem:[%s1734 + $0x28] sm:$0xff]
        %v1741 = vld [vmem:[%s1734 + $0x30] sm:$0xff]
        %v1742 = vld [vmem:[%s1734 + $0x38] sm:$0xff]
        %v1743 = vld [vmem:[%s1734 + $0x40] sm:$0xff]
        %v1744 = vld [vmem:[%s1734 + $0x48] sm:$0xff]
        %v1745 = vld [vmem:[%s1734 + $0x50] sm:$0xff]
        %v1746 = vld [vmem:[%s1734 + $0x58] sm:$0xff]
        %v1747 = vld [vmem:[%s1734 + $0x60] sm:$0xff]
        %v1748 = vld [vmem:[%s1734 + $0x68] sm:$0xff]
        %v1749 = vld [vmem:[%s1734 + $0x70] sm:$0xff]
        %v1750 = vld [vmem:[%s1734 + $0x78] sm:$0xff]
        %1751 = vmatprep.subr.mxu0 0.0
        %1752 = vmatpush1.msra.mxu0 %v1750
        %1753 = vmatprep.subr.mxu0 0.0
        %1754 = vmatpush1.msra.mxu0 %v1749
        %1755 = vmatprep.subr.mxu0 0.0
        %1756 = vmatpush1.msra.mxu0 %v1748
        %1757 = vmatprep.subr.mxu0 0.0
        %1758 = vmatpush1.msra.mxu0 %v1747
        %1759 = vmatprep.subr.mxu0 0.0
        %1760 = vmatpush1.msra.mxu0 %v1746
        %1761 = vmatprep.subr.mxu0 0.0
        %1762 = vmatpush1.msra.mxu0 %v1745
        %1763 = vmatprep.subr.mxu0 0.0
        %1764 = vmatpush1.msra.mxu0 %v1744
        %1765 = vmatprep.subr.mxu0 0.0
        %1766 = vmatpush1.msra.mxu0 %v1743
        %1767 = vmatprep.subr.mxu0 0.0
        %1768 = vmatpush1.msra.mxu0 %v1742
        %1769 = vmatprep.subr.mxu0 0.0
        %1770 = vmatpush1.msra.mxu0 %v1741
        %1771 = vmatprep.subr.mxu0 0.0
        %1772 = vmatpush1.msra.mxu0 %v1740
        %1773 = vmatprep.subr.mxu0 0.0
        %1774 = vmatpush1.msra.mxu0 %v1739
        %1775 = vmatprep.subr.mxu0 0.0
        %1776 = vmatpush1.msra.mxu0 %v1738
        %1777 = vmatprep.subr.mxu0 0.0
        %1778 = vmatpush1.msra.mxu0 %v1737
        %1779 = vmatprep.subr.mxu0 0.0
        %1780 = vmatpush1.msra.mxu0 %v1736
        %1781 = vmatprep.subr.mxu0 0.0
        %1782 = vmatpush1.msra.mxu0 %v1735
        %1783 = vmatprep.subr.mxu0 0.0
        %1784 = vmatpush2.msra.mxu0 0.0
        %1785 = vmatprep.subr.mxu0 0.0
        %1786 = vmatpush2.msra.mxu0 0.0
        %1787 = vmatprep.subr.mxu0 0.0
        %1788 = vmatpush2.msra.mxu0 0.0
        %1789 = vmatprep.subr.mxu0 0.0
        %1790 = vmatpush2.msra.mxu0 0.0
        %1791 = vmatprep.subr.mxu0 0.0
        %1792 = vmatpush2.msra.mxu0 0.0
        %1793 = vmatprep.subr.mxu0 0.0
        %1794 = vmatpush2.msra.mxu0 0.0
        %1795 = vmatprep.subr.mxu0 0.0
        %1796 = vmatpush2.msra.mxu0 0.0
        %1797 = vmatprep.subr.mxu0 0.0
        %1798 = vmatpush2.msra.mxu0 0.0
        %1799 = vmatprep.subr.mxu0 0.0
        %1800 = vmatpush2.msra.mxu0 0.0
        %1801 = vmatprep.subr.mxu0 0.0
        %1802 = vmatpush2.msra.mxu0 0.0
        %1803 = vmatprep.subr.mxu0 0.0
        %1804 = vmatpush2.msra.mxu0 0.0
        %1805 = vmatprep.subr.mxu0 0.0
        %1806 = vmatpush2.msra.mxu0 0.0
        %1807 = vmatprep.subr.mxu0 0.0
        %1808 = vmatpush2.msra.mxu0 0.0
        %1809 = vmatprep.subr.mxu0 0.0
        %1810 = vmatpush2.msra.mxu0 0.0
        %1811 = vmatprep.subr.mxu0 0.0
        %1812 = vmatpush2.msra.mxu0 0.0
        %1813 = vmatprep.subr.mxu0 0.0
        %1814 = vmatpush2.msra.mxu0 0.0
        %1815 = vmatprep.mubr.f32.mxu0 0.0
        %1816 = vmatmul.mubr.f32.gmra.mxu0 %v1718
        %v1817 = vpop.f32.mrf.mxu0
        %v1818 = vadd.f32 0.0, %v1817
        %v1819 = vpop.f32.mrf.mxu0
        %1820 = vmatprep.mubr.f32.mxu0 0.0
        %1821 = vmatmul.mubr.f32.gmra.mxu0 %v1719
        %v1822 = vpop.f32.mrf.mxu0
        %v1823 = vadd.f32 0.0, %v1822
        %v1824 = vpop.f32.mrf.mxu0
        %1825 = vmatprep.mubr.f32.mxu0 0.0
        %1826 = vmatmul.mubr.f32.gmra.mxu0 %v1720
        %v1827 = vpop.f32.mrf.mxu0
        %v1828 = vadd.f32 0.0, %v1827
        %v1829 = vpop.f32.mrf.mxu0
        %1830 = vmatprep.mubr.f32.mxu0 0.0
        %1831 = vmatmul.mubr.f32.gmra.mxu0 %v1721
        %v1832 = vpop.f32.mrf.mxu0
        %v1833 = vadd.f32 0.0, %v1832
        %v1834 = vpop.f32.mrf.mxu0
        %1835 = vmatprep.mubr.f32.mxu0 0.0
        %1836 = vmatmul.mubr.f32.gmra.mxu0 %v1722
        %v1837 = vpop.f32.mrf.mxu0
        %v1838 = vadd.f32 0.0, %v1837
        %v1839 = vpop.f32.mrf.mxu0
        %1840 = vmatprep.mubr.f32.mxu0 0.0
        %1841 = vmatmul.mubr.f32.gmra.mxu0 %v1723
        %v1842 = vpop.f32.mrf.mxu0
        %v1843 = vadd.f32 0.0, %v1842
        %v1844 = vpop.f32.mrf.mxu0
        %1845 = vmatprep.mubr.f32.mxu0 0.0
        %1846 = vmatmul.mubr.f32.gmra.mxu0 %v1724
        %v1847 = vpop.f32.mrf.mxu0
        %v1848 = vadd.f32 0.0, %v1847
        %v1849 = vpop.f32.mrf.mxu0
        %1850 = vmatprep.mubr.f32.mxu0 0.0
        %1851 = vmatmul.mubr.f32.gmra.mxu0 %v1725
        %v1852 = vpop.f32.mrf.mxu0
        %v1853 = vadd.f32 0.0, %v1852
        %v1854 = vpop.f32.mrf.mxu0
        %1855 = vmatprep.mubr.f32.mxu0 0.0
        %1856 = vmatmul.mubr.f32.gmra.mxu0 %v1726
        %v1857 = vpop.f32.mrf.mxu0
        %v1858 = vadd.f32 0.0, %v1857
        %v1859 = vpop.f32.mrf.mxu0
        %1860 = vmatprep.mubr.f32.mxu0 0.0
        %1861 = vmatmul.mubr.f32.gmra.mxu0 %v1727
        %v1862 = vpop.f32.mrf.mxu0
        %v1863 = vadd.f32 0.0, %v1862
        %v1864 = vpop.f32.mrf.mxu0
        %1865 = vmatprep.mubr.f32.mxu0 0.0
        %1866 = vmatmul.mubr.f32.gmra.mxu0 %v1728
        %v1867 = vpop.f32.mrf.mxu0
        %v1868 = vadd.f32 0.0, %v1867
        %v1869 = vpop.f32.mrf.mxu0
        %1870 = vmatprep.mubr.f32.mxu0 0.0
        %1871 = vmatmul.mubr.f32.gmra.mxu0 %v1729
        %v1872 = vpop.f32.mrf.mxu0
        %v1873 = vadd.f32 0.0, %v1872
        %v1874 = vpop.f32.mrf.mxu0
        %1875 = vmatprep.mubr.f32.mxu0 0.0
        %1876 = vmatmul.mubr.f32.gmra.mxu0 %v1730
        %v1877 = vpop.f32.mrf.mxu0
        %v1878 = vadd.f32 0.0, %v1877
        %v1879 = vpop.f32.mrf.mxu0
        %1880 = vmatprep.mubr.f32.mxu0 0.0
        %1881 = vmatmul.mubr.f32.gmra.mxu0 %v1731
        %v1882 = vpop.f32.mrf.mxu0
        %v1883 = vadd.f32 0.0, %v1882
        %v1884 = vpop.f32.mrf.mxu0
        %1885 = vmatprep.mubr.f32.mxu0 0.0
        %1886 = vmatmul.mubr.f32.gmra.mxu0 %v1732
        %v1887 = vpop.f32.mrf.mxu0
        %v1888 = vadd.f32 0.0, %v1887
        %v1889 = vpop.f32.mrf.mxu0
        %1890 = vmatprep.mubr.f32.mxu0 0.0
        %1891 = vmatmul.mubr.f32.gmra.mxu0 %v1733
        %v1892 = vpop.f32.mrf.mxu0
        %v1893 = vadd.f32 0.0, %v1892
        %v1894 = vpop.f32.mrf.mxu0
        %1895 = vdwg.mxu0
        %v1896 = vadd.f32 %v1702, %v1818
        %v1897 = vadd.f32 %v1703, %v1823
        %v1898 = vadd.f32 %v1704, %v1828
        %v1899 = vadd.f32 %v1705, %v1833
        %v1900 = vadd.f32 %v1706, %v1838
        %v1901 = vadd.f32 %v1707, %v1843
        %v1902 = vadd.f32 %v1708, %v1848
        %v1903 = vadd.f32 %v1709, %v1853
        %v1904 = vadd.f32 %v1710, %v1858
        %v1905 = vadd.f32 %v1711, %v1863
        %v1906 = vadd.f32 %v1712, %v1868
        %v1907 = vadd.f32 %v1713, %v1873
        %v1908 = vadd.f32 %v1714, %v1878
        %v1909 = vadd.f32 %v1715, %v1883
        %v1910 = vadd.f32 %v1716, %v1888
        %v1911 = vadd.f32 %v1717, %v1893
        %v1912 = vld [vmem:[%s2] sm:$0x1]
        %v1914 = vlaneseq
        %v1915 = vshrl.u32 %v1914, 7
        %v1916 = vsub.s32 0, %v1915
        %v1917 = vrot.slane %v1912, %v1916
        %v1919 = vadd.f32 %v1896, %v1917
        %v1920 = vadd.f32 %v1897, %v1917
        %v1921 = vadd.f32 %v1898, %v1917
        %v1922 = vadd.f32 %v1899, %v1917
        %v1923 = vadd.f32 %v1900, %v1917
        %v1924 = vadd.f32 %v1901, %v1917
        %v1925 = vadd.f32 %v1902, %v1917
        %v1926 = vadd.f32 %v1903, %v1917
        %v1927 = vadd.f32 %v1904, %v1917
        %v1928 = vadd.f32 %v1905, %v1917
        %v1929 = vadd.f32 %v1906, %v1917
        %v1930 = vadd.f32 %v1907, %v1917
        %v1931 = vadd.f32 %v1908, %v1917
        %v1932 = vadd.f32 %v1909, %v1917
        %v1933 = vadd.f32 %v1910, %v1917
        %v1934 = vadd.f32 %v1911, %v1917
        %1935 = vst [vmem:[%s187] sm:$0xff] %v1919
        %1936 = vst [vmem:[%s187 + $0x8] sm:$0xff] %v1920
        %1937 = vst [vmem:[%s187 + $0x10] sm:$0xff] %v1921
        %1938 = vst [vmem:[%s187 + $0x18] sm:$0xff] %v1922
        %1939 = vst [vmem:[%s187 + $0x20] sm:$0xff] %v1923
        %1940 = vst [vmem:[%s187 + $0x28] sm:$0xff] %v1924
        %1941 = vst [vmem:[%s187 + $0x30] sm:$0xff] %v1925
        %1942 = vst [vmem:[%s187 + $0x38] sm:$0xff] %v1926
        %1943 = vst [vmem:[%s187 + $0x40] sm:$0xff] %v1927
        %1944 = vst [vmem:[%s187 + $0x48] sm:$0xff] %v1928
        %1945 = vst [vmem:[%s187 + $0x50] sm:$0xff] %v1929
        %1946 = vst [vmem:[%s187 + $0x58] sm:$0xff] %v1930
        %1947 = vst [vmem:[%s187 + $0x60] sm:$0xff] %v1931
        %1948 = vst [vmem:[%s187 + $0x68] sm:$0xff] %v1932
        %1949 = vst [vmem:[%s187 + $0x70] sm:$0xff] %v1933
        %1950 = vst [vmem:[%s187 + $0x78] sm:$0xff] %v1934
        %s1951 = sand.u32 %s109, 1
        %s1952 = scalar_lea.sflag [#allocation3], %s1951
        %s1953 = sand.u32 %s109, 1
        %s1954 = smul.addr %s1953, 128
        %s1955 = scalar_lea.vmem [#allocation2], %s1954
        // Predicated region
        $region33: #{tpu_custom_call.1} parent=31 // pred_check
          %p1956 = pneg %p119
        $region34: #{tpu_custom_call.1} parent=31 // pred_check_branch
          %1958 = sbr.rel (%p1956) target = $region36
        $region35: #{tpu_custom_call.1} parent=31 // pred_region
          %s1960 = ssub.s32 2048, 2048
          %1961 = vsyncadd %s1952, %s1960
          %s1962 = smul.addr %s22, 16
          %s1963 = smul.addr %s21, 32
          %s1964 = sadd.s32 %s1962, %s1963
          %s1965 = smul.addr %s1964, 128
          %s1966 = scalar_lea.hbm %s3, %s1965
          %s1967 = sshll.u32 %s1955, 4
          %s1968 = int_to_ptr.vmem [resolvable:$true] %s1967
          %1973 = dma.vmem_to_hbm [thread:$0]  %s1968, 2048, %s1966, %s1952, 128, 128, 8
        $region36: #{tpu_custom_call.1} parent=31 // pred_fallthru
          _
      $region32: #{tpu_custom_call.1} parent=5 // pred_fallthru
        _
      %p1974 = scmp.le.s32.totalorder 2, %s12
      // Predicated region
      $region37: #{tpu_custom_call.1} parent=5 // pred_check
        %p1975 = pneg %p1974
      $region38: #{tpu_custom_call.1} parent=5 // pred_check_branch
        %1977 = sbr.rel (%p1975) target = $region40
      $region39: #{tpu_custom_call.1} parent=5 // pred_region
        %s1978 = ssub.s32 %s12, 2
        // Predicated region
        $region41: #{tpu_custom_call.1} parent=39 // pred_check
          %p1979 = pneg %p125
        $region42: #{tpu_custom_call.1} parent=39 // pred_check_branch
          %1981 = sbr.rel (%p1979) target = $region44
        $region43: #{tpu_custom_call.1} parent=39 // pred_region
          %s1982 = sand.u32 %s110, 1
          %s1983 = scalar_lea.sflag [#allocation3], %s1982
          %s1984 = sand.u32 %s110, 1
          %s1985 = smul.addr %s1984, 128
          %s1986 = scalar_lea.vmem [#allocation2], %s1985
          %1987 = dma.done %s1983, 2048
        $region44: #{tpu_custom_call.1} parent=39 // pred_fallthru
          _
      $region40: #{tpu_custom_call.1} parent=5 // pred_fallthru
        _
    $region6: #{tpu_custom_call.1} parent=1 // loop_footer
      %s16 = sadd.s32 1, %s12
    $region7: #{tpu_custom_call.1} parent=1 // loop_footer_branch
      %11 = sbr.rel target = $region3
    $region8: #{tpu_custom_call.1} parent=1 // loop_exit
      _
    %1988 = vsyncpa [#allocation3], 1
    %s1989 = scalar_lea.sflag [#allocation3], 1
    %1990 = vsyncpa %s1989, 1

</llo_original>
